<compile_context>
chip_gen: v6e
topology: v6e:2x2x1
jax: 0.10.0
libtpu: 0.0.40
codegen_flags: <defaults>
</compile_context>

<pallas_src>
import math
import functools

import jax
import jax.numpy as jnp
from jax import lax
from jax.experimental import pallas as pl
from jax.experimental.pallas import tpu as pltpu


# ----------------------------------------------------------------------------
# Fused kernel: all LSTM layers + out[:, -1, :] readout + optional classifier
# ----------------------------------------------------------------------------
def _make_kernel(*, T, B, H, num_dirs, num_layers, has_classifier, n_seq):
    bidir = num_dirs == 2
    DH = H * num_dirs            # per-step state width (h_fwd | h_bwd)
    G = 4 * DH                   # packed gate width [i | f | o | g]

    def kernel(*refs):
        it = iter(refs)
        x_ref = next(it)                                   # (T*B, Din) bf16
        layer_refs = []
        for _ in range(num_layers):
            wa_ref = next(it)                              # (in_dim, G) bf16
            wb_ref = next(it) if bidir else None           # (in_dim, G) bf16
            whh_ref = next(it)                             # (DH, G) bf16
            b_ref = next(it)                               # (1, G) f32
            layer_refs.append((wa_ref, wb_ref, whh_ref, b_ref))
        wc_ref = next(it) if has_classifier else None      # (DH, C) bf16
        bc_ref = next(it) if has_classifier else None      # (1, C) f32
        out_ref = next(it)                                 # (B, out_dim) f32
        seq_refs = [next(it) for _ in range(n_seq)]        # (T*B, DH) f32
        gx_ref = next(it)                                  # (T*B, G) f32
        gxb_ref = next(it) if bidir else None              # (T*B, G) f32

        cur_in = x_ref
        h_last = None
        h_first = None
        for l, (wa_ref, wb_ref, whh_ref, b_ref) in enumerate(layer_refs):
            is_last = l == num_layers - 1
            whh = whh_ref[...]                             # bf16, layer-resident
            b = b_ref[...]                                 # f32

            # ---- hoisted input projection: ONE fused matmul per direction
            # covers every timestep (off the serial critical path); bias is
            # added with a single broadcast.
            xin = cur_in[...]
            if xin.dtype != jnp.bfloat16:
                xin = xin.astype(jnp.bfloat16)
            gx_ref[...] = jnp.dot(xin, wa_ref[...],
                                  preferred_element_type=jnp.float32) + b
            if bidir:
                gxb_ref[...] = jnp.dot(xin, wb_ref[...],
                                       preferred_element_type=jnp.float32)

            # ---- serial recurrence (statically unrolled; T small & static).
            # Per step: one tiny (B,DH)x(DH,G) block-diagonal matmul driving
            # BOTH directions + one contiguous sigmoid + one tanh.
            # TODO(synk): switch to lax.fori_loop(..., unroll=4) + pl.ds once
            #             T grows past ~16 (bound vreg live ranges).
            # TODO(synk): hold Whh in the MXU via matmul_push_rhs/acc_lhs/pop
            #             instead of re-pushing the same RHS every step.
            out_seq = None if is_last else seq_refs[l % n_seq]
            h = jnp.zeros((B, DH), jnp.float32)
            c = jnp.zeros((B, DH), jnp.float32)
            for t in range(T):
                gates = gx_ref[t * B:(t + 1) * B, :] + jnp.dot(
                    h.astype(jnp.bfloat16), whh,
                    preferred_element_type=jnp.float32)
                if bidir:
                    # backward-direction contribution of x[T-1-t]: static
                    # reversed read (no flip, no RMW pre-pass).
                    gates = gates + gxb_ref[(T - 1 - t) * B:(T - t) * B, :]
                # gate layout [i | f | o | g], each DH wide, fwd|bwd interleaved
                # inside each block: one 3*DH-lane sigmoid, one DH-lane tanh.
                sg = jax.nn.sigmoid(gates[:, 0:3 * DH])
                gi = sg[:, 0:DH]
                gf = sg[:, DH:2 * DH]
                go = sg[:, 2 * DH:3 * DH]
                gg = jnp.tanh(gates[:, 3 * DH:G])
                c = gf * c + gi * gg
                h = go * jnp.tanh(c)
                if not is_last:
                    # stored convention: rows [t*B, (t+1)*B) hold
                    # [h_fwd(t) | h_bwd(T-1-t)]; the re-alignment for the next
                    # layer is baked into its packed input weights.
                    out_seq[t * B:(t + 1) * B, :] = h
                if t == 0:
                    h_first = h
            h_last = h
            if not is_last:
                cur_in = out_seq

        # ---- out[:, -1, :] readout: assemble in registers, single store ----
        if bidir:
            lane = lax.broadcasted_iota(jnp.int32, (B, DH), 1)
            # lanes [0,H): forward h at t=T-1; lanes [H,DH): backward h at t=T-1
            last = jnp.where(lane < H, h_last, h_first)
        else:
            last = h_last
        if has_classifier:
            out_ref[...] = (jnp.dot(last.astype(jnp.bfloat16), wc_ref[...],
                                    preferred_element_type=jnp.float32)
                            + bc_ref[...])
        else:
            out_ref[...] = last

    return kernel


# ----------------------------------------------------------------------------
# Wrapper: one pallas_call for the whole forward pass
# ----------------------------------------------------------------------------
def lstm_pallas_forward(x, packed, *, hidden_dim, num_layers, bidirectional,
                        num_classes):
    B, T, Din = x.shape
    assert T >= 1, "sequence length must be >= 1"
    H = hidden_dim
    D = 2 if bidirectional else 1
    DH = H * D
    G = 4 * DH
    has_cls = num_classes is not None
    if has_cls:
        assert packed['Wc'].shape[0] == DH, (
            "classifier input width must match the LSTM output width "
            f"({packed['Wc'].shape[0]} vs {DH}); nn.Linear(hidden_dim, C) is "
            "only compatible with a unidirectional LSTM")
        out_dim = packed['Wc'].shape[1]
    else:
        out_dim = DH

    # Pad batch to a full f32 sublane tile (8): masked sublanes are pure waste.
    B_pad = max(8, -(-B // 8) * 8)
    if B_pad != B:
        x = jnp.pad(x, ((0, B_pad - B), (0, 0), (0, 0)))
    # Time-major, flattened to (T*B_pad, Din): every layer's input projection
    # is a single MXU matmul; cast to bf16 at the matmul boundary.
    x2d = jnp.transpose(x, (1, 0, 2)).reshape(T * B_pad, Din).astype(jnp.bfloat16)

    args = [x2d]
    for l in range(num_layers):
        args.append(packed['WA'][l])
        if bidirectional:
            args.append(packed['WB'][l])
        args.append(packed['Whh'][l])
        args.append(packed['b'][l])
    if has_cls:
        args += [packed['Wc'], packed['bc']]

    n_seq = min(2, num_layers - 1)   # ping-pong buffers for intermediate layers
    kernel = _make_kernel(T=T, B=B_pad, H=H, num_dirs=D, num_layers=num_layers,
                          has_classifier=has_cls, n_seq=n_seq)
    vmem = pl.BlockSpec(memory_space=pltpu.MemorySpace.VMEM)
    scratch = [pltpu.VMEM((T * B_pad, DH), jnp.float32) for _ in range(n_seq)]
    scratch.append(pltpu.VMEM((T * B_pad, G), jnp.float32))      # gx (fwd proj)
    if bidirectional:
        scratch.append(pltpu.VMEM((T * B_pad, G), jnp.float32))  # gxb (bwd proj)

    out = pl.pallas_call(
        kernel,
        out_shape=jax.ShapeDtypeStruct((B_pad, out_dim), jnp.float32),
        in_specs=[vmem] * len(args),
        out_specs=vmem,
        scratch_shapes=scratch,
        compiler_params=pltpu.CompilerParams(
            vmem_limit_bytes=32 * 1024 * 1024),
    )(*args)
    return out[:B]


# ----------------------------------------------------------------------------
# Weight packing: gate reorder [i|f|o|g], direction fusion, time re-alignment,
# bf16 matmul operands (biases stay f32).
# ----------------------------------------------------------------------------
_SRC2DST = (0, 1, 3, 2)   # source gate order [i, f, g, o] -> packed [i, f, o, g]


def pack_params(params, hidden_dim, num_layers, bidirectional):
    H = hidden_dim
    D = 2 if bidirectional else 1
    DH = H * D
    G = 4 * DH
    packed = {'WA': [], 'WB': [], 'Whh': [], 'b': []}
    for l in range(num_layers):
        if not bidirectional:
            w_ih, w_hh, b_ih, b_hh = params['lstm'][l][0]
            bsum = b_ih + b_hh
            WA = jnp.zeros((w_ih.shape[0], G), jnp.float32)
            Whh = jnp.zeros((H, G), jnp.float32)
            b = jnp.zeros((1, G), jnp.float32)
            for s in range(4):
                d = _SRC2DST[s]
                dc = slice(d * H, (d + 1) * H)
                sc = slice(s * H, (s + 1) * H)
                WA = WA.at[:, dc].set(w_ih[:, sc])
                Whh = Whh.at[:, dc].set(w_hh[:, sc])
                b = b.at[0, dc].set(bsum[sc])
            packed['WA'].append(WA.astype(jnp.bfloat16))
            packed['Whh'].append(Whh.astype(jnp.bfloat16))
            packed['b'].append(b)
            continue
        w_ih_f, w_hh_f, b_ih_f, b_hh_f = params['lstm'][l][0]
        w_ih_b, w_hh_b, b_ih_b, b_hh_b = params['lstm'][l][1]
        in_dim = w_ih_f.shape[0]
        WA = jnp.zeros((in_dim, G), jnp.float32)   # multiplies stored row t
        WB = jnp.zeros((in_dim, G), jnp.float32)   # multiplies stored row T-1-t
        Whh = jnp.zeros((DH, G), jnp.float32)      # block-diag recurrent weight
        b = jnp.zeros((1, G), jnp.float32)
        bf = b_ih_f + b_hh_f
        bb = b_ih_b + b_hh_b
        for s in range(4):
            d = _SRC2DST[s]
            fc = slice(d * DH, d * DH + H)          # fwd lanes of packed gate d
            bc = slice(d * DH + H, (d + 1) * DH)    # bwd lanes of packed gate d
            sc = slice(s * H, (s + 1) * H)          # source gate s columns
            Whh = Whh.at[0:H, fc].set(w_hh_f[:, sc])
            Whh = Whh.at[H:DH, bc].set(w_hh_b[:, sc])
            b = b.at[0, fc].set(bf[sc])
            b = b.at[0, bc].set(bb[sc])
            if l == 0:
                WA = WA.at[:, fc].set(w_ih_f[:, sc])
                WB = WB.at[:, bc].set(w_ih_b[:, sc])
            else:
                # previous layer stored [h_fwd(t) | h_bwd(T-1-t)]; fold the
                # time re-alignment of the backward half into WA / WB.
                WA = WA.at[0:H, fc].set(w_ih_f[0:H, sc])
                WA = WA.at[H:DH, bc].set(w_ih_b[H:DH, sc])
                WB = WB.at[0:H, bc].set(w_ih_b[0:H, sc])
                WB = WB.at[H:DH, fc].set(w_ih_f[H:DH, sc])
        packed['WA'].append(WA.astype(jnp.bfloat16))
        packed['WB'].append(WB.astype(jnp.bfloat16))
        packed['Whh'].append(Whh.astype(jnp.bfloat16))
        packed['b'].append(b)
    if 'w_cls' in params:
        packed['Wc'] = params['w_cls'].astype(jnp.bfloat16)
        packed['bc'] = params['b_cls']
    return packed


# ----------------------------------------------------------------------------
# Pure-JAX f32 reference (matches PyTorch nn.LSTM forward semantics)
# ----------------------------------------------------------------------------
def reference_forward(x, params, hidden_dim, num_layers, bidirectional,
                      num_classes):
    H = hidden_dim
    num_dirs = 2 if bidirectional else 1

    def run_dir(xs, w_ih, w_hh, b_ih, b_hh):
        Bn = xs.shape[1]

        def step(carry, x_t):
            h, c = carry
            gates = x_t @ w_ih + h @ w_hh + b_ih + b_hh
            i = jax.nn.sigmoid(gates[:, 0:H])
            f = jax.nn.sigmoid(gates[:, H:2 * H])
            g = jnp.tanh(gates[:, 2 * H:3 * H])
            o = jax.nn.sigmoid(gates[:, 3 * H:4 * H])
            c = f * c + i * g
            h = o * jnp.tanh(c)
            return (h, c), h

        init = (jnp.zeros((Bn, H), jnp.float32),
                jnp.zeros((Bn, H), jnp.float32))
        _, hs = lax.scan(step, init, xs)
        return hs

    inp = x
    for layer in range(num_layers):
        outs = []
        for d in range(num_dirs):
            w_ih, w_hh, b_ih, b_hh = params['lstm'][layer][d]
            xd = inp if d == 0 else jnp.flip(inp, axis=1)
            o = jnp.transpose(
                run_dir(jnp.transpose(xd, (1, 0, 2)), w_ih, w_hh, b_ih, b_hh),
                (1, 0, 2))
            if d == 1:
                o = jnp.flip(o, axis=1)
            outs.append(o)
        inp = jnp.concatenate(outs, axis=-1) if num_dirs == 2 else outs[0]
    last = inp[:, -1, :]
    if num_classes is not None:
        return last @ params['w_cls'] + params['b_cls']
    return last


# ----------------------------------------------------------------------------
# Deterministic parameter construction (shapes from nn.LSTM / nn.Linear)
# ----------------------------------------------------------------------------
def init_params(key, input_dim, hidden_dim, num_layers, bidirectional,
                num_classes):
    num_dirs = 2 if bidirectional else 1
    k = 1.0 / math.sqrt(hidden_dim)
    params = {'lstm': []}
    for layer in range(num_layers):
        in_dim = input_dim if layer == 0 else hidden_dim * num_dirs
        dirs = []
        for _ in range(num_dirs):
            key, k1, k2, k3, k4 = jax.random.split(key, 5)
            w_ih = jax.random.uniform(k1, (in_dim, 4 * hidden_dim),
                                      jnp.float32, -k, k)
            w_hh = jax.random.uniform(k2, (hidden_dim, 4 * hidden_dim),
                                      jnp.float32, -k, k)
            b_ih = jax.random.uniform(k3, (4 * hidden_dim,), jnp.float32, -k, k)
            b_hh = jax.random.uniform(k4, (4 * hidden_dim,), jnp.float32, -k, k)
            dirs.append((w_ih, w_hh, b_ih, b_hh))
        params['lstm'].append(dirs)
    if num_classes is not None:
        kc = 1.0 / math.sqrt(hidden_dim)       # nn.Linear(hidden_dim, C)
        key, k1, k2 = jax.random.split(key, 3)
        params['w_cls'] = jax.random.uniform(k1, (hidden_dim, num_classes),
                                             jnp.float32, -kc, kc)
        params['b_cls'] = jax.random.uniform(k2, (1, num_classes),
                                             jnp.float32, -kc, kc)
    return params


if __name__ == "__main__":
    B, T, D_IN = 2, 8, 16
    HIDDEN, NUM_LAYERS = 32, 2
    # Kernel uses bf16 MXU matmuls (f32 accumulation, f32 state/nonlinearities);
    # parity vs. the pure-f32 reference is checked at a correspondingly
    # loosened tolerance (structural bugs produce O(0.1+) errors).
    ATOL = RTOL = 3e-2

    key = jax.random.PRNGKey(0)
    key, kx = jax.random.split(key)
    x = jax.random.normal(kx, (B, T, D_IN), jnp.float32)

    # Config A: bidirectional LSTM, num_classes=None -> returns out[:, -1, :]
    params_a = init_params(key, D_IN, HIDDEN, NUM_LAYERS, True, None)
    packed_a = pack_params(params_a, HIDDEN, NUM_LAYERS, True)
    fwd_a = jax.jit(functools.partial(
        lstm_pallas_forward, hidden_dim=HIDDEN, num_layers=NUM_LAYERS,
        bidirectional=True, num_classes=None))
    out_a = fwd_a(x, packed_a)
    jax.block_until_ready(out_a)
    ref_a = reference_forward(x, params_a, HIDDEN, NUM_LAYERS, True, None)
    assert out_a.shape == (B, 2 * HIDDEN)
    assert jnp.allclose(out_a, ref_a, atol=ATOL, rtol=RTOL), (
        float(jnp.max(jnp.abs(out_a - ref_a))))

    # Config B: unidirectional LSTM + Linear(hidden_dim, num_classes)
    NUM_CLASSES = 4
    key_b = jax.random.PRNGKey(1)
    params_b = init_params(key_b, D_IN, HIDDEN, NUM_LAYERS, False, NUM_CLASSES)
    packed_b = pack_params(params_b, HIDDEN, NUM_LAYERS, False)
    fwd_b = jax.jit(functools.partial(
        lstm_pallas_forward, hidden_dim=HIDDEN, num_layers=NUM_LAYERS,
        bidirectional=False, num_classes=NUM_CLASSES))
    out_b = fwd_b(x, packed_b)
    jax.block_until_ready(out_b)
    ref_b = reference_forward(x, params_b, HIDDEN, NUM_LAYERS, False,
                              NUM_CLASSES)
    assert out_b.shape == (B, NUM_CLASSES)
    assert jnp.allclose(out_b, ref_b, atol=ATOL, rtol=RTOL), (
        float(jnp.max(jnp.abs(out_b - ref_b))))

    print("KERNEL_OK")
</pallas_src>

<mosaic_0001>
module attributes {stable_mosaic.version = 11 : i64} {
  func.func @kernel(%arg0: memref<64x16xbf16, #tpu.memory_space<vmem>>, %arg1: memref<16x256xbf16, #tpu.memory_space<vmem>>, %arg2: memref<16x256xbf16, #tpu.memory_space<vmem>>, %arg3: memref<64x256xbf16, #tpu.memory_space<vmem>>, %arg4: memref<1x256xf32, #tpu.memory_space<vmem>>, %arg5: memref<64x256xbf16, #tpu.memory_space<vmem>>, %arg6: memref<64x256xbf16, #tpu.memory_space<vmem>>, %arg7: memref<64x256xbf16, #tpu.memory_space<vmem>>, %arg8: memref<1x256xf32, #tpu.memory_space<vmem>>, %arg9: memref<8x64xf32, #tpu.memory_space<vmem>>, %arg10: memref<64x64xf32, #tpu.memory_space<vmem>>, %arg11: memref<64x256xf32, #tpu.memory_space<vmem>>, %arg12: memref<64x256xf32, #tpu.memory_space<vmem>>) attributes {dimension_semantics = [], scalar_prefetch = 0 : i64, scratch_operands = 3 : i64, tpu.core_type = #tpu.core_type<tc>} {
    %c0 = arith.constant 0 : index
    %c0_0 = arith.constant 0 : index
    %0 = vector.load %arg3[%c0, %c0_0] : memref<64x256xbf16, #tpu.memory_space<vmem>>, vector<64x256xbf16>
    %c0_1 = arith.constant 0 : index
    %c0_2 = arith.constant 0 : index
    %1 = vector.load %arg4[%c0_1, %c0_2] : memref<1x256xf32, #tpu.memory_space<vmem>>, vector<1x256xf32>
    %c0_3 = arith.constant 0 : index
    %c0_4 = arith.constant 0 : index
    %2 = vector.load %arg0[%c0_3, %c0_4] : memref<64x16xbf16, #tpu.memory_space<vmem>>, vector<64x16xbf16>
    %c0_5 = arith.constant 0 : index
    %c0_6 = arith.constant 0 : index
    %3 = vector.load %arg1[%c0_5, %c0_6] : memref<16x256xbf16, #tpu.memory_space<vmem>>, vector<16x256xbf16>
    %cst = arith.constant dense<0.000000e+00> : vector<64x256xf32>
    %4 = tpu.matmul %2, %3, %cst {dimension_numbers = #tpu.dot_dimension_numbers<[1], [0], [0], [1], [0, 0, 1, 1], [], []>} : vector<64x16xbf16>, vector<16x256xbf16>, vector<64x256xf32> -> vector<64x256xf32>
    %5 = vector.broadcast %1 : vector<1x256xf32> to vector<64x256xf32>
    %6 = arith.addf %4, %5 : vector<64x256xf32>
    %c0_7 = arith.constant 0 : index
    %c0_8 = arith.constant 0 : index
    %7 = vector.load %arg11[%c0_7, %c0_8] : memref<64x256xf32, #tpu.memory_space<vmem>>, vector<64x256xf32>
    tpu.vector_store %arg11[%c0_7, %c0_8], %6 {strides = array<i32>} : memref<64x256xf32, #tpu.memory_space<vmem>>, vector<64x256xf32>,
    %c0_9 = arith.constant 0 : index
    %c0_10 = arith.constant 0 : index
    %8 = vector.load %arg2[%c0_9, %c0_10] : memref<16x256xbf16, #tpu.memory_space<vmem>>, vector<16x256xbf16>
    %cst_11 = arith.constant dense<0.000000e+00> : vector<64x256xf32>
    %9 = tpu.matmul %2, %8, %cst_11 {dimension_numbers = #tpu.dot_dimension_numbers<[1], [0], [0], [1], [0, 0, 1, 1], [], []>} : vector<64x16xbf16>, vector<16x256xbf16>, vector<64x256xf32> -> vector<64x256xf32>
    %c0_12 = arith.constant 0 : index
    %c0_13 = arith.constant 0 : index
    %10 = vector.load %arg12[%c0_12, %c0_13] : memref<64x256xf32, #tpu.memory_space<vmem>>, vector<64x256xf32>
    tpu.vector_store %arg12[%c0_12, %c0_13], %9 {strides = array<i32>} : memref<64x256xf32, #tpu.memory_space<vmem>>, vector<64x256xf32>,
    %cst_14 = arith.constant 0.000000e+00 : f32
    %11 = vector.broadcast %cst_14 : f32 to vector<8x64xf32>
    %cst_15 = arith.constant 0.000000e+00 : f32
    %12 = vector.broadcast %cst_15 : f32 to vector<8x64xf32>
    %c0_16 = arith.constant 0 : index
    %c0_17 = arith.constant 0 : index
    %13 = vector.load %arg11[%c0_16, %c0_17] : memref<64x256xf32, #tpu.memory_space<vmem>>, vector<8x256xf32>
    %14 = arith.truncf %11 : vector<8x64xf32> to vector<8x64xbf16>
    %cst_18 = arith.constant dense<0.000000e+00> : vector<8x256xf32>
    %15 = tpu.matmul %14, %0, %cst_18 {dimension_numbers = #tpu.dot_dimension_numbers<[1], [0], [0], [1], [0, 0, 1, 1], [], []>} : vector<8x64xbf16>, vector<64x256xbf16>, vector<8x256xf32> -> vector<8x256xf32>
    %16 = arith.addf %13, %15 : vector<8x256xf32>
    %c56 = arith.constant 56 : index
    %c0_19 = arith.constant 0 : index
    %17 = vector.load %arg12[%c56, %c0_19] : memref<64x256xf32, #tpu.memory_space<vmem>>, vector<8x256xf32>
    %18 = arith.addf %16, %17 : vector<8x256xf32>
    %19 = vector.extract_strided_slice %18 {offsets = [0, 0], sizes = [8, 192], strides = [1, 1]} : vector<8x256xf32> to vector<8x192xf32>
    %20 = arith.negf %19 : vector<8x192xf32>
    %21 = math.exp %20 : vector<8x192xf32>
    %cst_20 = arith.constant 1.000000e+00 : f32
    %22 = vector.broadcast %cst_20 : f32 to vector<8x192xf32>
    %23 = arith.addf %22, %21 : vector<8x192xf32>
    %24 = arith.divf %22, %23 : vector<8x192xf32>
    %25 = vector.extract_strided_slice %24 {offsets = [0, 0], sizes = [8, 64], strides = [1, 1]} : vector<8x192xf32> to vector<8x64xf32>
    %26 = vector.extract_strided_slice %24 {offsets = [0, 64], sizes = [8, 64], strides = [1, 1]} : vector<8x192xf32> to vector<8x64xf32>
    %27 = vector.extract_strided_slice %24 {offsets = [0, 128], sizes = [8, 64], strides = [1, 1]} : vector<8x192xf32> to vector<8x64xf32>
    %28 = vector.extract_strided_slice %18 {offsets = [0, 192], sizes = [8, 64], strides = [1, 1]} : vector<8x256xf32> to vector<8x64xf32>
    %29 = math.tanh %28 : vector<8x64xf32>
    %30 = arith.mulf %26, %12 : vector<8x64xf32>
    %31 = arith.mulf %25, %29 : vector<8x64xf32>
    %32 = arith.addf %30, %31 : vector<8x64xf32>
    %33 = math.tanh %32 : vector<8x64xf32>
    %34 = arith.mulf %27, %33 : vector<8x64xf32>
    %c0_21 = arith.constant 0 : index
    %c0_22 = arith.constant 0 : index
    %35 = vector.load %arg10[%c0_21, %c0_22] : memref<64x64xf32, #tpu.memory_space<vmem>>, vector<8x64xf32>
    tpu.vector_store %arg10[%c0_21, %c0_22], %34 {strides = array<i32>} : memref<64x64xf32, #tpu.memory_space<vmem>>, vector<8x64xf32>,
    %c8 = arith.constant 8 : index
    %c0_23 = arith.constant 0 : index
    %36 = vector.load %arg11[%c8, %c0_23] : memref<64x256xf32, #tpu.memory_space<vmem>>, vector<8x256xf32>
    %37 = arith.truncf %34 : vector<8x64xf32> to vector<8x64xbf16>
    %cst_24 = arith.constant dense<0.000000e+00> : vector<8x256xf32>
    %38 = tpu.matmul %37, %0, %cst_24 {dimension_numbers = #tpu.dot_dimension_numbers<[1], [0], [0], [1], [0, 0, 1, 1], [], []>} : vector<8x64xbf16>, vector<64x256xbf16>, vector<8x256xf32> -> vector<8x256xf32>
    %39 = arith.addf %36, %38 : vector<8x256xf32>
    %c48 = arith.constant 48 : index
    %c0_25 = arith.constant 0 : index
    %40 = vector.load %arg12[%c48, %c0_25] : memref<64x256xf32, #tpu.memory_space<vmem>>, vector<8x256xf32>
    %41 = arith.addf %39, %40 : vector<8x256xf32>
    %42 = vector.extract_strided_slice %41 {offsets = [0, 0], sizes = [8, 192], strides = [1, 1]} : vector<8x256xf32> to vector<8x192xf32>
    %43 = arith.negf %42 : vector<8x192xf32>
    %44 = math.exp %43 : vector<8x192xf32>
    %cst_26 = arith.constant 1.000000e+00 : f32
    %45 = vector.broadcast %cst_26 : f32 to vector<8x192xf32>
    %46 = arith.addf %45, %44 : vector<8x192xf32>
    %47 = arith.divf %45, %46 : vector<8x192xf32>
    %48 = vector.extract_strided_slice %47 {offsets = [0, 0], sizes = [8, 64], strides = [1, 1]} : vector<8x192xf32> to vector<8x64xf32>
    %49 = vector.extract_strided_slice %47 {offsets = [0, 64], sizes = [8, 64], strides = [1, 1]} : vector<8x192xf32> to vector<8x64xf32>
    %50 = vector.extract_strided_slice %47 {offsets = [0, 128], sizes = [8, 64], strides = [1, 1]} : vector<8x192xf32> to vector<8x64xf32>
    %51 = vector.extract_strided_slice %41 {offsets = [0, 192], sizes = [8, 64], strides = [1, 1]} : vector<8x256xf32> to vector<8x64xf32>
    %52 = math.tanh %51 : vector<8x64xf32>
    %53 = arith.mulf %49, %32 : vector<8x64xf32>
    %54 = arith.mulf %48, %52 : vector<8x64xf32>
    %55 = arith.addf %53, %54 : vector<8x64xf32>
    %56 = math.tanh %55 : vector<8x64xf32>
    %57 = arith.mulf %50, %56 : vector<8x64xf32>
    %c8_27 = arith.constant 8 : index
    %c0_28 = arith.constant 0 : index
    %58 = vector.load %arg10[%c8_27, %c0_28] : memref<64x64xf32, #tpu.memory_space<vmem>>, vector<8x64xf32>
    tpu.vector_store %arg10[%c8_27, %c0_28], %57 {strides = array<i32>} : memref<64x64xf32, #tpu.memory_space<vmem>>, vector<8x64xf32>,
    %c16 = arith.constant 16 : index
    %c0_29 = arith.constant 0 : index
    %59 = vector.load %arg11[%c16, %c0_29] : memref<64x256xf32, #tpu.memory_space<vmem>>, vector<8x256xf32>
    %60 = arith.truncf %57 : vector<8x64xf32> to vector<8x64xbf16>
    %cst_30 = arith.constant dense<0.000000e+00> : vector<8x256xf32>
    %61 = tpu.matmul %60, %0, %cst_30 {dimension_numbers = #tpu.dot_dimension_numbers<[1], [0], [0], [1], [0, 0, 1, 1], [], []>} : vector<8x64xbf16>, vector<64x256xbf16>, vector<8x256xf32> -> vector<8x256xf32>
    %62 = arith.addf %59, %61 : vector<8x256xf32>
    %c40 = arith.constant 40 : index
    %c0_31 = arith.constant 0 : index
    %63 = vector.load %arg12[%c40, %c0_31] : memref<64x256xf32, #tpu.memory_space<vmem>>, vector<8x256xf32>
    %64 = arith.addf %62, %63 : vector<8x256xf32>
    %65 = vector.extract_strided_slice %64 {offsets = [0, 0], sizes = [8, 192], strides = [1, 1]} : vector<8x256xf32> to vector<8x192xf32>
    %66 = arith.negf %65 : vector<8x192xf32>
    %67 = math.exp %66 : vector<8x192xf32>
    %cst_32 = arith.constant 1.000000e+00 : f32
    %68 = vector.broadcast %cst_32 : f32 to vector<8x192xf32>
    %69 = arith.addf %68, %67 : vector<8x192xf32>
    %70 = arith.divf %68, %69 : vector<8x192xf32>
    %71 = vector.extract_strided_slice %70 {offsets = [0, 0], sizes = [8, 64], strides = [1, 1]} : vector<8x192xf32> to vector<8x64xf32>
    %72 = vector.extract_strided_slice %70 {offsets = [0, 64], sizes = [8, 64], strides = [1, 1]} : vector<8x192xf32> to vector<8x64xf32>
    %73 = vector.extract_strided_slice %70 {offsets = [0, 128], sizes = [8, 64], strides = [1, 1]} : vector<8x192xf32> to vector<8x64xf32>
    %74 = vector.extract_strided_slice %64 {offsets = [0, 192], sizes = [8, 64], strides = [1, 1]} : vector<8x256xf32> to vector<8x64xf32>
    %75 = math.tanh %74 : vector<8x64xf32>
    %76 = arith.mulf %72, %55 : vector<8x64xf32>
    %77 = arith.mulf %71, %75 : vector<8x64xf32>
    %78 = arith.addf %76, %77 : vector<8x64xf32>
    %79 = math.tanh %78 : vector<8x64xf32>
    %80 = arith.mulf %73, %79 : vector<8x64xf32>
    %c16_33 = arith.constant 16 : index
    %c0_34 = arith.constant 0 : index
    %81 = vector.load %arg10[%c16_33, %c0_34] : memref<64x64xf32, #tpu.memory_space<vmem>>, vector<8x64xf32>
    tpu.vector_store %arg10[%c16_33, %c0_34], %80 {strides = array<i32>} : memref<64x64xf32, #tpu.memory_space<vmem>>, vector<8x64xf32>,
    %c24 = arith.constant 24 : index
    %c0_35 = arith.constant 0 : index
    %82 = vector.load %arg11[%c24, %c0_35] : memref<64x256xf32, #tpu.memory_space<vmem>>, vector<8x256xf32>
    %83 = arith.truncf %80 : vector<8x64xf32> to vector<8x64xbf16>
    %cst_36 = arith.constant dense<0.000000e+00> : vector<8x256xf32>
    %84 = tpu.matmul %83, %0, %cst_36 {dimension_numbers = #tpu.dot_dimension_numbers<[1], [0], [0], [1], [0, 0, 1, 1], [], []>} : vector<8x64xbf16>, vector<64x256xbf16>, vector<8x256xf32> -> vector<8x256xf32>
    %85 = arith.addf %82, %84 : vector<8x256xf32>
    %c32 = arith.constant 32 : index
    %c0_37 = arith.constant 0 : index
    %86 = vector.load %arg12[%c32, %c0_37] : memref<64x256xf32, #tpu.memory_space<vmem>>, vector<8x256xf32>
    %87 = arith.addf %85, %86 : vector<8x256xf32>
    %88 = vector.extract_strided_slice %87 {offsets = [0, 0], sizes = [8, 192], strides = [1, 1]} : vector<8x256xf32> to vector<8x192xf32>
    %89 = arith.negf %88 : vector<8x192xf32>
    %90 = math.exp %89 : vector<8x192xf32>
    %cst_38 = arith.constant 1.000000e+00 : f32
    %91 = vector.broadcast %cst_38 : f32 to vector<8x192xf32>
    %92 = arith.addf %91, %90 : vector<8x192xf32>
    %93 = arith.divf %91, %92 : vector<8x192xf32>
    %94 = vector.extract_strided_slice %93 {offsets = [0, 0], sizes = [8, 64], strides = [1, 1]} : vector<8x192xf32> to vector<8x64xf32>
    %95 = vector.extract_strided_slice %93 {offsets = [0, 64], sizes = [8, 64], strides = [1, 1]} : vector<8x192xf32> to vector<8x64xf32>
    %96 = vector.extract_strided_slice %93 {offsets = [0, 128], sizes = [8, 64], strides = [1, 1]} : vector<8x192xf32> to vector<8x64xf32>
    %97 = vector.extract_strided_slice %87 {offsets = [0, 192], sizes = [8, 64], strides = [1, 1]} : vector<8x256xf32> to vector<8x64xf32>
    %98 = math.tanh %97 : vector<8x64xf32>
    %99 = arith.mulf %95, %78 : vector<8x64xf32>
    %100 = arith.mulf %94, %98 : vector<8x64xf32>
    %101 = arith.addf %99, %100 : vector<8x64xf32>
    %102 = math.tanh %101 : vector<8x64xf32>
    %103 = arith.mulf %96, %102 : vector<8x64xf32>
    %c24_39 = arith.constant 24 : index
    %c0_40 = arith.constant 0 : index
    %104 = vector.load %arg10[%c24_39, %c0_40] : memref<64x64xf32, #tpu.memory_space<vmem>>, vector<8x64xf32>
    tpu.vector_store %arg10[%c24_39, %c0_40], %103 {strides = array<i32>} : memref<64x64xf32, #tpu.memory_space<vmem>>, vector<8x64xf32>,
    %c32_41 = arith.constant 32 : index
    %c0_42 = arith.constant 0 : index
    %105 = vector.load %arg11[%c32_41, %c0_42] : memref<64x256xf32, #tpu.memory_space<vmem>>, vector<8x256xf32>
    %106 = arith.truncf %103 : vector<8x64xf32> to vector<8x64xbf16>
    %cst_43 = arith.constant dense<0.000000e+00> : vector<8x256xf32>
    %107 = tpu.matmul %106, %0, %cst_43 {dimension_numbers = #tpu.dot_dimension_numbers<[1], [0], [0], [1], [0, 0, 1, 1], [], []>} : vector<8x64xbf16>, vector<64x256xbf16>, vector<8x256xf32> -> vector<8x256xf32>
    %108 = arith.addf %105, %107 : vector<8x256xf32>
    %c24_44 = arith.constant 24 : index
    %c0_45 = arith.constant 0 : index
    %109 = vector.load %arg12[%c24_44, %c0_45] : memref<64x256xf32, #tpu.memory_space<vmem>>, vector<8x256xf32>
    %110 = arith.addf %108, %109 : vector<8x256xf32>
    %111 = vector.extract_strided_slice %110 {offsets = [0, 0], sizes = [8, 192], strides = [1, 1]} : vector<8x256xf32> to vector<8x192xf32>
    %112 = arith.negf %111 : vector<8x192xf32>
    %113 = math.exp %112 : vector<8x192xf32>
    %cst_46 = arith.constant 1.000000e+00 : f32
    %114 = vector.broadcast %cst_46 : f32 to vector<8x192xf32>
    %115 = arith.addf %114, %113 : vector<8x192xf32>
    %116 = arith.divf %114, %115 : vector<8x192xf32>
    %117 = vector.extract_strided_slice %116 {offsets = [0, 0], sizes = [8, 64], strides = [1, 1]} : vector<8x192xf32> to vector<8x64xf32>
    %118 = vector.extract_strided_slice %116 {offsets = [0, 64], sizes = [8, 64], strides = [1, 1]} : vector<8x192xf32> to vector<8x64xf32>
    %119 = vector.extract_strided_slice %116 {offsets = [0, 128], sizes = [8, 64], strides = [1, 1]} : vector<8x192xf32> to vector<8x64xf32>
    %120 = vector.extract_strided_slice %110 {offsets = [0, 192], sizes = [8, 64], strides = [1, 1]} : vector<8x256xf32> to vector<8x64xf32>
    %121 = math.tanh %120 : vector<8x64xf32>
    %122 = arith.mulf %118, %101 : vector<8x64xf32>
    %123 = arith.mulf %117, %121 : vector<8x64xf32>
    %124 = arith.addf %122, %123 : vector<8x64xf32>
    %125 = math.tanh %124 : vector<8x64xf32>
    %126 = arith.mulf %119, %125 : vector<8x64xf32>
    %c32_47 = arith.constant 32 : index
    %c0_48 = arith.constant 0 : index
    %127 = vector.load %arg10[%c32_47, %c0_48] : memref<64x64xf32, #tpu.memory_space<vmem>>, vector<8x64xf32>
    tpu.vector_store %arg10[%c32_47, %c0_48], %126 {strides = array<i32>} : memref<64x64xf32, #tpu.memory_space<vmem>>, vector<8x64xf32>,
    %c40_49 = arith.constant 40 : index
    %c0_50 = arith.constant 0 : index
    %128 = vector.load %arg11[%c40_49, %c0_50] : memref<64x256xf32, #tpu.memory_space<vmem>>, vector<8x256xf32>
    %129 = arith.truncf %126 : vector<8x64xf32> to vector<8x64xbf16>
    %cst_51 = arith.constant dense<0.000000e+00> : vector<8x256xf32>
    %130 = tpu.matmul %129, %0, %cst_51 {dimension_numbers = #tpu.dot_dimension_numbers<[1], [0], [0], [1], [0, 0, 1, 1], [], []>} : vector<8x64xbf16>, vector<64x256xbf16>, vector<8x256xf32> -> vector<8x256xf32>
    %131 = arith.addf %128, %130 : vector<8x256xf32>
    %c16_52 = arith.constant 16 : index
    %c0_53 = arith.constant 0 : index
    %132 = vector.load %arg12[%c16_52, %c0_53] : memref<64x256xf32, #tpu.memory_space<vmem>>, vector<8x256xf32>
    %133 = arith.addf %131, %132 : vector<8x256xf32>
    %134 = vector.extract_strided_slice %133 {offsets = [0, 0], sizes = [8, 192], strides = [1, 1]} : vector<8x256xf32> to vector<8x192xf32>
    %135 = arith.negf %134 : vector<8x192xf32>
    %136 = math.exp %135 : vector<8x192xf32>
    %cst_54 = arith.constant 1.000000e+00 : f32
    %137 = vector.broadcast %cst_54 : f32 to vector<8x192xf32>
    %138 = arith.addf %137, %136 : vector<8x192xf32>
    %139 = arith.divf %137, %138 : vector<8x192xf32>
    %140 = vector.extract_strided_slice %139 {offsets = [0, 0], sizes = [8, 64], strides = [1, 1]} : vector<8x192xf32> to vector<8x64xf32>
    %141 = vector.extract_strided_slice %139 {offsets = [0, 64], sizes = [8, 64], strides = [1, 1]} : vector<8x192xf32> to vector<8x64xf32>
    %142 = vector.extract_strided_slice %139 {offsets = [0, 128], sizes = [8, 64], strides = [1, 1]} : vector<8x192xf32> to vector<8x64xf32>
    %143 = vector.extract_strided_slice %133 {offsets = [0, 192], sizes = [8, 64], strides = [1, 1]} : vector<8x256xf32> to vector<8x64xf32>
    %144 = math.tanh %143 : vector<8x64xf32>
    %145 = arith.mulf %141, %124 : vector<8x64xf32>
    %146 = arith.mulf %140, %144 : vector<8x64xf32>
    %147 = arith.addf %145, %146 : vector<8x64xf32>
    %148 = math.tanh %147 : vector<8x64xf32>
    %149 = arith.mulf %142, %148 : vector<8x64xf32>
    %c40_55 = arith.constant 40 : index
    %c0_56 = arith.constant 0 : index
    %150 = vector.load %arg10[%c40_55, %c0_56] : memref<64x64xf32, #tpu.memory_space<vmem>>, vector<8x64xf32>
    tpu.vector_store %arg10[%c40_55, %c0_56], %149 {strides = array<i32>} : memref<64x64xf32, #tpu.memory_space<vmem>>, vector<8x64xf32>,
    %c48_57 = arith.constant 48 : index
    %c0_58 = arith.constant 0 : index
    %151 = vector.load %arg11[%c48_57, %c0_58] : memref<64x256xf32, #tpu.memory_space<vmem>>, vector<8x256xf32>
    %152 = arith.truncf %149 : vector<8x64xf32> to vector<8x64xbf16>
    %cst_59 = arith.constant dense<0.000000e+00> : vector<8x256xf32>
    %153 = tpu.matmul %152, %0, %cst_59 {dimension_numbers = #tpu.dot_dimension_numbers<[1], [0], [0], [1], [0, 0, 1, 1], [], []>} : vector<8x64xbf16>, vector<64x256xbf16>, vector<8x256xf32> -> vector<8x256xf32>
    %154 = arith.addf %151, %153 : vector<8x256xf32>
    %c8_60 = arith.constant 8 : index
    %c0_61 = arith.constant 0 : index
    %155 = vector.load %arg12[%c8_60, %c0_61] : memref<64x256xf32, #tpu.memory_space<vmem>>, vector<8x256xf32>
    %156 = arith.addf %154, %155 : vector<8x256xf32>
    %157 = vector.extract_strided_slice %156 {offsets = [0, 0], sizes = [8, 192], strides = [1, 1]} : vector<8x256xf32> to vector<8x192xf32>
    %158 = arith.negf %157 : vector<8x192xf32>
    %159 = math.exp %158 : vector<8x192xf32>
    %cst_62 = arith.constant 1.000000e+00 : f32
    %160 = vector.broadcast %cst_62 : f32 to vector<8x192xf32>
    %161 = arith.addf %160, %159 : vector<8x192xf32>
    %162 = arith.divf %160, %161 : vector<8x192xf32>
    %163 = vector.extract_strided_slice %162 {offsets = [0, 0], sizes = [8, 64], strides = [1, 1]} : vector<8x192xf32> to vector<8x64xf32>
    %164 = vector.extract_strided_slice %162 {offsets = [0, 64], sizes = [8, 64], strides = [1, 1]} : vector<8x192xf32> to vector<8x64xf32>
    %165 = vector.extract_strided_slice %162 {offsets = [0, 128], sizes = [8, 64], strides = [1, 1]} : vector<8x192xf32> to vector<8x64xf32>
    %166 = vector.extract_strided_slice %156 {offsets = [0, 192], sizes = [8, 64], strides = [1, 1]} : vector<8x256xf32> to vector<8x64xf32>
    %167 = math.tanh %166 : vector<8x64xf32>
    %168 = arith.mulf %164, %147 : vector<8x64xf32>
    %169 = arith.mulf %163, %167 : vector<8x64xf32>
    %170 = arith.addf %168, %169 : vector<8x64xf32>
    %171 = math.tanh %170 : vector<8x64xf32>
    %172 = arith.mulf %165, %171 : vector<8x64xf32>
    %c48_63 = arith.constant 48 : index
    %c0_64 = arith.constant 0 : index
    %173 = vector.load %arg10[%c48_63, %c0_64] : memref<64x64xf32, #tpu.memory_space<vmem>>, vector<8x64xf32>
    tpu.vector_store %arg10[%c48_63, %c0_64], %172 {strides = array<i32>} : memref<64x64xf32, #tpu.memory_space<vmem>>, vector<8x64xf32>,
    %c56_65 = arith.constant 56 : index
    %c0_66 = arith.constant 0 : index
    %174 = vector.load %arg11[%c56_65, %c0_66] : memref<64x256xf32, #tpu.memory_space<vmem>>, vector<8x256xf32>
    %175 = arith.truncf %172 : vector<8x64xf32> to vector<8x64xbf16>
    %cst_67 = arith.constant dense<0.000000e+00> : vector<8x256xf32>
    %176 = tpu.matmul %175, %0, %cst_67 {dimension_numbers = #tpu.dot_dimension_numbers<[1], [0], [0], [1], [0, 0, 1, 1], [], []>} : vector<8x64xbf16>, vector<64x256xbf16>, vector<8x256xf32> -> vector<8x256xf32>
    %177 = arith.addf %174, %176 : vector<8x256xf32>
    %c0_68 = arith.constant 0 : index
    %c0_69 = arith.constant 0 : index
    %178 = vector.load %arg12[%c0_68, %c0_69] : memref<64x256xf32, #tpu.memory_space<vmem>>, vector<8x256xf32>
    %179 = arith.addf %177, %178 : vector<8x256xf32>
    %180 = vector.extract_strided_slice %179 {offsets = [0, 0], sizes = [8, 192], strides = [1, 1]} : vector<8x256xf32> to vector<8x192xf32>
    %181 = arith.negf %180 : vector<8x192xf32>
    %182 = math.exp %181 : vector<8x192xf32>
    %cst_70 = arith.constant 1.000000e+00 : f32
    %183 = vector.broadcast %cst_70 : f32 to vector<8x192xf32>
    %184 = arith.addf %183, %182 : vector<8x192xf32>
    %185 = arith.divf %183, %184 : vector<8x192xf32>
    %186 = vector.extract_strided_slice %185 {offsets = [0, 0], sizes = [8, 64], strides = [1, 1]} : vector<8x192xf32> to vector<8x64xf32>
    %187 = vector.extract_strided_slice %185 {offsets = [0, 64], sizes = [8, 64], strides = [1, 1]} : vector<8x192xf32> to vector<8x64xf32>
    %188 = vector.extract_strided_slice %185 {offsets = [0, 128], sizes = [8, 64], strides = [1, 1]} : vector<8x192xf32> to vector<8x64xf32>
    %189 = vector.extract_strided_slice %179 {offsets = [0, 192], sizes = [8, 64], strides = [1, 1]} : vector<8x256xf32> to vector<8x64xf32>
    %190 = math.tanh %189 : vector<8x64xf32>
    %191 = arith.mulf %187, %170 : vector<8x64xf32>
    %192 = arith.mulf %186, %190 : vector<8x64xf32>
    %193 = arith.addf %191, %192 : vector<8x64xf32>
    %194 = math.tanh %193 : vector<8x64xf32>
    %195 = arith.mulf %188, %194 : vector<8x64xf32>
    %c56_71 = arith.constant 56 : index
    %c0_72 = arith.constant 0 : index
    %196 = vector.load %arg10[%c56_71, %c0_72] : memref<64x64xf32, #tpu.memory_space<vmem>>, vector<8x64xf32>
    tpu.vector_store %arg10[%c56_71, %c0_72], %195 {strides = array<i32>} : memref<64x64xf32, #tpu.memory_space<vmem>>, vector<8x64xf32>,
    %c0_73 = arith.constant 0 : index
    %c0_74 = arith.constant 0 : index
    %197 = vector.load %arg7[%c0_73, %c0_74] : memref<64x256xbf16, #tpu.memory_space<vmem>>, vector<64x256xbf16>
    %c0_75 = arith.constant 0 : index
    %c0_76 = arith.constant 0 : index
    %198 = vector.load %arg8[%c0_75, %c0_76] : memref<1x256xf32, #tpu.memory_space<vmem>>, vector<1x256xf32>
    %c0_77 = arith.constant 0 : index
    %c0_78 = arith.constant 0 : index
    %199 = vector.load %arg10[%c0_77, %c0_78] : memref<64x64xf32, #tpu.memory_space<vmem>>, vector<64x64xf32>
    %200 = arith.truncf %199 : vector<64x64xf32> to vector<64x64xbf16>
    %c0_79 = arith.constant 0 : index
    %c0_80 = arith.constant 0 : index
    %201 = vector.load %arg5[%c0_79, %c0_80] : memref<64x256xbf16, #tpu.memory_space<vmem>>, vector<64x256xbf16>
    %cst_81 = arith.constant dense<0.000000e+00> : vector<64x256xf32>
    %202 = tpu.matmul %200, %201, %cst_81 {dimension_numbers = #tpu.dot_dimension_numbers<[1], [0], [0], [1], [0, 0, 1, 1], [], []>} : vector<64x64xbf16>, vector<64x256xbf16>, vector<64x256xf32> -> vector<64x256xf32>
    %203 = vector.broadcast %198 : vector<1x256xf32> to vector<64x256xf32>
    %204 = arith.addf %202, %203 : vector<64x256xf32>
    %c0_82 = arith.constant 0 : index
    %c0_83 = arith.constant 0 : index
    %205 = vector.load %arg11[%c0_82, %c0_83] : memref<64x256xf32, #tpu.memory_space<vmem>>, vector<64x256xf32>
    tpu.vector_store %arg11[%c0_82, %c0_83], %204 {strides = array<i32>} : memref<64x256xf32, #tpu.memory_space<vmem>>, vector<64x256xf32>,
    %c0_84 = arith.constant 0 : index
    %c0_85 = arith.constant 0 : index
    %206 = vector.load %arg6[%c0_84, %c0_85] : memref<64x256xbf16, #tpu.memory_space<vmem>>, vector<64x256xbf16>
    %cst_86 = arith.constant dense<0.000000e+00> : vector<64x256xf32>
    %207 = tpu.matmul %200, %206, %cst_86 {dimension_numbers = #tpu.dot_dimension_numbers<[1], [0], [0], [1], [0, 0, 1, 1], [], []>} : vector<64x64xbf16>, vector<64x256xbf16>, vector<64x256xf32> -> vector<64x256xf32>
    %c0_87 = arith.constant 0 : index
    %c0_88 = arith.constant 0 : index
    %208 = vector.load %arg12[%c0_87, %c0_88] : memref<64x256xf32, #tpu.memory_space<vmem>>, vector<64x256xf32>
    tpu.vector_store %arg12[%c0_87, %c0_88], %207 {strides = array<i32>} : memref<64x256xf32, #tpu.memory_space<vmem>>, vector<64x256xf32>,
    %cst_89 = arith.constant 0.000000e+00 : f32
    %209 = vector.broadcast %cst_89 : f32 to vector<8x64xf32>
    %cst_90 = arith.constant 0.000000e+00 : f32
    %210 = vector.broadcast %cst_90 : f32 to vector<8x64xf32>
    %c0_91 = arith.constant 0 : index
    %c0_92 = arith.constant 0 : index
    %211 = vector.load %arg11[%c0_91, %c0_92] : memref<64x256xf32, #tpu.memory_space<vmem>>, vector<8x256xf32>
    %212 = arith.truncf %209 : vector<8x64xf32> to vector<8x64xbf16>
    %cst_93 = arith.constant dense<0.000000e+00> : vector<8x256xf32>
    %213 = tpu.matmul %212, %197, %cst_93 {dimension_numbers = #tpu.dot_dimension_numbers<[1], [0], [0], [1], [0, 0, 1, 1], [], []>} : vector<8x64xbf16>, vector<64x256xbf16>, vector<8x256xf32> -> vector<8x256xf32>
    %214 = arith.addf %211, %213 : vector<8x256xf32>
    %c56_94 = arith.constant 56 : index
    %c0_95 = arith.constant 0 : index
    %215 = vector.load %arg12[%c56_94, %c0_95] : memref<64x256xf32, #tpu.memory_space<vmem>>, vector<8x256xf32>
    %216 = arith.addf %214, %215 : vector<8x256xf32>
    %217 = vector.extract_strided_slice %216 {offsets = [0, 0], sizes = [8, 192], strides = [1, 1]} : vector<8x256xf32> to vector<8x192xf32>
    %218 = arith.negf %217 : vector<8x192xf32>
    %219 = math.exp %218 : vector<8x192xf32>
    %cst_96 = arith.constant 1.000000e+00 : f32
    %220 = vector.broadcast %cst_96 : f32 to vector<8x192xf32>
    %221 = arith.addf %220, %219 : vector<8x192xf32>
    %222 = arith.divf %220, %221 : vector<8x192xf32>
    %223 = vector.extract_strided_slice %222 {offsets = [0, 0], sizes = [8, 64], strides = [1, 1]} : vector<8x192xf32> to vector<8x64xf32>
    %224 = vector.extract_strided_slice %222 {offsets = [0, 64], sizes = [8, 64], strides = [1, 1]} : vector<8x192xf32> to vector<8x64xf32>
    %225 = vector.extract_strided_slice %222 {offsets = [0, 128], sizes = [8, 64], strides = [1, 1]} : vector<8x192xf32> to vector<8x64xf32>
    %226 = vector.extract_strided_slice %216 {offsets = [0, 192], sizes = [8, 64], strides = [1, 1]} : vector<8x256xf32> to vector<8x64xf32>
    %227 = math.tanh %226 : vector<8x64xf32>
    %228 = arith.mulf %224, %210 : vector<8x64xf32>
    %229 = arith.mulf %223, %227 : vector<8x64xf32>
    %230 = arith.addf %228, %229 : vector<8x64xf32>
    %231 = math.tanh %230 : vector<8x64xf32>
    %232 = arith.mulf %225, %231 : vector<8x64xf32>
    %c8_97 = arith.constant 8 : index
    %c0_98 = arith.constant 0 : index
    %233 = vector.load %arg11[%c8_97, %c0_98] : memref<64x256xf32, #tpu.memory_space<vmem>>, vector<8x256xf32>
    %234 = arith.truncf %232 : vector<8x64xf32> to vector<8x64xbf16>
    %cst_99 = arith.constant dense<0.000000e+00> : vector<8x256xf32>
    %235 = tpu.matmul %234, %197, %cst_99 {dimension_numbers = #tpu.dot_dimension_numbers<[1], [0], [0], [1], [0, 0, 1, 1], [], []>} : vector<8x64xbf16>, vector<64x256xbf16>, vector<8x256xf32> -> vector<8x256xf32>
    %236 = arith.addf %233, %235 : vector<8x256xf32>
    %c48_100 = arith.constant 48 : index
    %c0_101 = arith.constant 0 : index
    %237 = vector.load %arg12[%c48_100, %c0_101] : memref<64x256xf32, #tpu.memory_space<vmem>>, vector<8x256xf32>
    %238 = arith.addf %236, %237 : vector<8x256xf32>
    %239 = vector.extract_strided_slice %238 {offsets = [0, 0], sizes = [8, 192], strides = [1, 1]} : vector<8x256xf32> to vector<8x192xf32>
    %240 = arith.negf %239 : vector<8x192xf32>
    %241 = math.exp %240 : vector<8x192xf32>
    %cst_102 = arith.constant 1.000000e+00 : f32
    %242 = vector.broadcast %cst_102 : f32 to vector<8x192xf32>
    %243 = arith.addf %242, %241 : vector<8x192xf32>
    %244 = arith.divf %242, %243 : vector<8x192xf32>
    %245 = vector.extract_strided_slice %244 {offsets = [0, 0], sizes = [8, 64], strides = [1, 1]} : vector<8x192xf32> to vector<8x64xf32>
    %246 = vector.extract_strided_slice %244 {offsets = [0, 64], sizes = [8, 64], strides = [1, 1]} : vector<8x192xf32> to vector<8x64xf32>
    %247 = vector.extract_strided_slice %244 {offsets = [0, 128], sizes = [8, 64], strides = [1, 1]} : vector<8x192xf32> to vector<8x64xf32>
    %248 = vector.extract_strided_slice %238 {offsets = [0, 192], sizes = [8, 64], strides = [1, 1]} : vector<8x256xf32> to vector<8x64xf32>
    %249 = math.tanh %248 : vector<8x64xf32>
    %250 = arith.mulf %246, %230 : vector<8x64xf32>
    %251 = arith.mulf %245, %249 : vector<8x64xf32>
    %252 = arith.addf %250, %251 : vector<8x64xf32>
    %253 = math.tanh %252 : vector<8x64xf32>
    %254 = arith.mulf %247, %253 : vector<8x64xf32>
    %c16_103 = arith.constant 16 : index
    %c0_104 = arith.constant 0 : index
    %255 = vector.load %arg11[%c16_103, %c0_104] : memref<64x256xf32, #tpu.memory_space<vmem>>, vector<8x256xf32>
    %256 = arith.truncf %254 : vector<8x64xf32> to vector<8x64xbf16>
    %cst_105 = arith.constant dense<0.000000e+00> : vector<8x256xf32>
    %257 = tpu.matmul %256, %197, %cst_105 {dimension_numbers = #tpu.dot_dimension_numbers<[1], [0], [0], [1], [0, 0, 1, 1], [], []>} : vector<8x64xbf16>, vector<64x256xbf16>, vector<8x256xf32> -> vector<8x256xf32>
    %258 = arith.addf %255, %257 : vector<8x256xf32>
    %c40_106 = arith.constant 40 : index
    %c0_107 = arith.constant 0 : index
    %259 = vector.load %arg12[%c40_106, %c0_107] : memref<64x256xf32, #tpu.memory_space<vmem>>, vector<8x256xf32>
    %260 = arith.addf %258, %259 : vector<8x256xf32>
    %261 = vector.extract_strided_slice %260 {offsets = [0, 0], sizes = [8, 192], strides = [1, 1]} : vector<8x256xf32> to vector<8x192xf32>
    %262 = arith.negf %261 : vector<8x192xf32>
    %263 = math.exp %262 : vector<8x192xf32>
    %cst_108 = arith.constant 1.000000e+00 : f32
    %264 = vector.broadcast %cst_108 : f32 to vector<8x192xf32>
    %265 = arith.addf %264, %263 : vector<8x192xf32>
    %266 = arith.divf %264, %265 : vector<8x192xf32>
    %267 = vector.extract_strided_slice %266 {offsets = [0, 0], sizes = [8, 64], strides = [1, 1]} : vector<8x192xf32> to vector<8x64xf32>
    %268 = vector.extract_strided_slice %266 {offsets = [0, 64], sizes = [8, 64], strides = [1, 1]} : vector<8x192xf32> to vector<8x64xf32>
    %269 = vector.extract_strided_slice %266 {offsets = [0, 128], sizes = [8, 64], strides = [1, 1]} : vector<8x192xf32> to vector<8x64xf32>
    %270 = vector.extract_strided_slice %260 {offsets = [0, 192], sizes = [8, 64], strides = [1, 1]} : vector<8x256xf32> to vector<8x64xf32>
    %271 = math.tanh %270 : vector<8x64xf32>
    %272 = arith.mulf %268, %252 : vector<8x64xf32>
    %273 = arith.mulf %267, %271 : vector<8x64xf32>
    %274 = arith.addf %272, %273 : vector<8x64xf32>
    %275 = math.tanh %274 : vector<8x64xf32>
    %276 = arith.mulf %269, %275 : vector<8x64xf32>
    %c24_109 = arith.constant 24 : index
    %c0_110 = arith.constant 0 : index
    %277 = vector.load %arg11[%c24_109, %c0_110] : memref<64x256xf32, #tpu.memory_space<vmem>>, vector<8x256xf32>
    %278 = arith.truncf %276 : vector<8x64xf32> to vector<8x64xbf16>
    %cst_111 = arith.constant dense<0.000000e+00> : vector<8x256xf32>
    %279 = tpu.matmul %278, %197, %cst_111 {dimension_numbers = #tpu.dot_dimension_numbers<[1], [0], [0], [1], [0, 0, 1, 1], [], []>} : vector<8x64xbf16>, vector<64x256xbf16>, vector<8x256xf32> -> vector<8x256xf32>
    %280 = arith.addf %277, %279 : vector<8x256xf32>
    %c32_112 = arith.constant 32 : index
    %c0_113 = arith.constant 0 : index
    %281 = vector.load %arg12[%c32_112, %c0_113] : memref<64x256xf32, #tpu.memory_space<vmem>>, vector<8x256xf32>
    %282 = arith.addf %280, %281 : vector<8x256xf32>
    %283 = vector.extract_strided_slice %282 {offsets = [0, 0], sizes = [8, 192], strides = [1, 1]} : vector<8x256xf32> to vector<8x192xf32>
    %284 = arith.negf %283 : vector<8x192xf32>
    %285 = math.exp %284 : vector<8x192xf32>
    %cst_114 = arith.constant 1.000000e+00 : f32
    %286 = vector.broadcast %cst_114 : f32 to vector<8x192xf32>
    %287 = arith.addf %286, %285 : vector<8x192xf32>
    %288 = arith.divf %286, %287 : vector<8x192xf32>
    %289 = vector.extract_strided_slice %288 {offsets = [0, 0], sizes = [8, 64], strides = [1, 1]} : vector<8x192xf32> to vector<8x64xf32>
    %290 = vector.extract_strided_slice %288 {offsets = [0, 64], sizes = [8, 64], strides = [1, 1]} : vector<8x192xf32> to vector<8x64xf32>
    %291 = vector.extract_strided_slice %288 {offsets = [0, 128], sizes = [8, 64], strides = [1, 1]} : vector<8x192xf32> to vector<8x64xf32>
    %292 = vector.extract_strided_slice %282 {offsets = [0, 192], sizes = [8, 64], strides = [1, 1]} : vector<8x256xf32> to vector<8x64xf32>
    %293 = math.tanh %292 : vector<8x64xf32>
    %294 = arith.mulf %290, %274 : vector<8x64xf32>
    %295 = arith.mulf %289, %293 : vector<8x64xf32>
    %296 = arith.addf %294, %295 : vector<8x64xf32>
    %297 = math.tanh %296 : vector<8x64xf32>
    %298 = arith.mulf %291, %297 : vector<8x64xf32>
    %c32_115 = arith.constant 32 : index
    %c0_116 = arith.constant 0 : index
    %299 = vector.load %arg11[%c32_115, %c0_116] : memref<64x256xf32, #tpu.memory_space<vmem>>, vector<8x256xf32>
    %300 = arith.truncf %298 : vector<8x64xf32> to vector<8x64xbf16>
    %cst_117 = arith.constant dense<0.000000e+00> : vector<8x256xf32>
    %301 = tpu.matmul %300, %197, %cst_117 {dimension_numbers = #tpu.dot_dimension_numbers<[1], [0], [0], [1], [0, 0, 1, 1], [], []>} : vector<8x64xbf16>, vector<64x256xbf16>, vector<8x256xf32> -> vector<8x256xf32>
    %302 = arith.addf %299, %301 : vector<8x256xf32>
    %c24_118 = arith.constant 24 : index
    %c0_119 = arith.constant 0 : index
    %303 = vector.load %arg12[%c24_118, %c0_119] : memref<64x256xf32, #tpu.memory_space<vmem>>, vector<8x256xf32>
    %304 = arith.addf %302, %303 : vector<8x256xf32>
    %305 = vector.extract_strided_slice %304 {offsets = [0, 0], sizes = [8, 192], strides = [1, 1]} : vector<8x256xf32> to vector<8x192xf32>
    %306 = arith.negf %305 : vector<8x192xf32>
    %307 = math.exp %306 : vector<8x192xf32>
    %cst_120 = arith.constant 1.000000e+00 : f32
    %308 = vector.broadcast %cst_120 : f32 to vector<8x192xf32>
    %309 = arith.addf %308, %307 : vector<8x192xf32>
    %310 = arith.divf %308, %309 : vector<8x192xf32>
    %311 = vector.extract_strided_slice %310 {offsets = [0, 0], sizes = [8, 64], strides = [1, 1]} : vector<8x192xf32> to vector<8x64xf32>
    %312 = vector.extract_strided_slice %310 {offsets = [0, 64], sizes = [8, 64], strides = [1, 1]} : vector<8x192xf32> to vector<8x64xf32>
    %313 = vector.extract_strided_slice %310 {offsets = [0, 128], sizes = [8, 64], strides = [1, 1]} : vector<8x192xf32> to vector<8x64xf32>
    %314 = vector.extract_strided_slice %304 {offsets = [0, 192], sizes = [8, 64], strides = [1, 1]} : vector<8x256xf32> to vector<8x64xf32>
    %315 = math.tanh %314 : vector<8x64xf32>
    %316 = arith.mulf %312, %296 : vector<8x64xf32>
    %317 = arith.mulf %311, %315 : vector<8x64xf32>
    %318 = arith.addf %316, %317 : vector<8x64xf32>
    %319 = math.tanh %318 : vector<8x64xf32>
    %320 = arith.mulf %313, %319 : vector<8x64xf32>
    %c40_121 = arith.constant 40 : index
    %c0_122 = arith.constant 0 : index
    %321 = vector.load %arg11[%c40_121, %c0_122] : memref<64x256xf32, #tpu.memory_space<vmem>>, vector<8x256xf32>
    %322 = arith.truncf %320 : vector<8x64xf32> to vector<8x64xbf16>
    %cst_123 = arith.constant dense<0.000000e+00> : vector<8x256xf32>
    %323 = tpu.matmul %322, %197, %cst_123 {dimension_numbers = #tpu.dot_dimension_numbers<[1], [0], [0], [1], [0, 0, 1, 1], [], []>} : vector<8x64xbf16>, vector<64x256xbf16>, vector<8x256xf32> -> vector<8x256xf32>
    %324 = arith.addf %321, %323 : vector<8x256xf32>
    %c16_124 = arith.constant 16 : index
    %c0_125 = arith.constant 0 : index
    %325 = vector.load %arg12[%c16_124, %c0_125] : memref<64x256xf32, #tpu.memory_space<vmem>>, vector<8x256xf32>
    %326 = arith.addf %324, %325 : vector<8x256xf32>
    %327 = vector.extract_strided_slice %326 {offsets = [0, 0], sizes = [8, 192], strides = [1, 1]} : vector<8x256xf32> to vector<8x192xf32>
    %328 = arith.negf %327 : vector<8x192xf32>
    %329 = math.exp %328 : vector<8x192xf32>
    %cst_126 = arith.constant 1.000000e+00 : f32
    %330 = vector.broadcast %cst_126 : f32 to vector<8x192xf32>
    %331 = arith.addf %330, %329 : vector<8x192xf32>
    %332 = arith.divf %330, %331 : vector<8x192xf32>
    %333 = vector.extract_strided_slice %332 {offsets = [0, 0], sizes = [8, 64], strides = [1, 1]} : vector<8x192xf32> to vector<8x64xf32>
    %334 = vector.extract_strided_slice %332 {offsets = [0, 64], sizes = [8, 64], strides = [1, 1]} : vector<8x192xf32> to vector<8x64xf32>
    %335 = vector.extract_strided_slice %332 {offsets = [0, 128], sizes = [8, 64], strides = [1, 1]} : vector<8x192xf32> to vector<8x64xf32>
    %336 = vector.extract_strided_slice %326 {offsets = [0, 192], sizes = [8, 64], strides = [1, 1]} : vector<8x256xf32> to vector<8x64xf32>
    %337 = math.tanh %336 : vector<8x64xf32>
    %338 = arith.mulf %334, %318 : vector<8x64xf32>
    %339 = arith.mulf %333, %337 : vector<8x64xf32>
    %340 = arith.addf %338, %339 : vector<8x64xf32>
    %341 = math.tanh %340 : vector<8x64xf32>
    %342 = arith.mulf %335, %341 : vector<8x64xf32>
    %c48_127 = arith.constant 48 : index
    %c0_128 = arith.constant 0 : index
    %343 = vector.load %arg11[%c48_127, %c0_128] : memref<64x256xf32, #tpu.memory_space<vmem>>, vector<8x256xf32>
    %344 = arith.truncf %342 : vector<8x64xf32> to vector<8x64xbf16>
    %cst_129 = arith.constant dense<0.000000e+00> : vector<8x256xf32>
    %345 = tpu.matmul %344, %197, %cst_129 {dimension_numbers = #tpu.dot_dimension_numbers<[1], [0], [0], [1], [0, 0, 1, 1], [], []>} : vector<8x64xbf16>, vector<64x256xbf16>, vector<8x256xf32> -> vector<8x256xf32>
    %346 = arith.addf %343, %345 : vector<8x256xf32>
    %c8_130 = arith.constant 8 : index
    %c0_131 = arith.constant 0 : index
    %347 = vector.load %arg12[%c8_130, %c0_131] : memref<64x256xf32, #tpu.memory_space<vmem>>, vector<8x256xf32>
    %348 = arith.addf %346, %347 : vector<8x256xf32>
    %349 = vector.extract_strided_slice %348 {offsets = [0, 0], sizes = [8, 192], strides = [1, 1]} : vector<8x256xf32> to vector<8x192xf32>
    %350 = arith.negf %349 : vector<8x192xf32>
    %351 = math.exp %350 : vector<8x192xf32>
    %cst_132 = arith.constant 1.000000e+00 : f32
    %352 = vector.broadcast %cst_132 : f32 to vector<8x192xf32>
    %353 = arith.addf %352, %351 : vector<8x192xf32>
    %354 = arith.divf %352, %353 : vector<8x192xf32>
    %355 = vector.extract_strided_slice %354 {offsets = [0, 0], sizes = [8, 64], strides = [1, 1]} : vector<8x192xf32> to vector<8x64xf32>
    %356 = vector.extract_strided_slice %354 {offsets = [0, 64], sizes = [8, 64], strides = [1, 1]} : vector<8x192xf32> to vector<8x64xf32>
    %357 = vector.extract_strided_slice %354 {offsets = [0, 128], sizes = [8, 64], strides = [1, 1]} : vector<8x192xf32> to vector<8x64xf32>
    %358 = vector.extract_strided_slice %348 {offsets = [0, 192], sizes = [8, 64], strides = [1, 1]} : vector<8x256xf32> to vector<8x64xf32>
    %359 = math.tanh %358 : vector<8x64xf32>
    %360 = arith.mulf %356, %340 : vector<8x64xf32>
    %361 = arith.mulf %355, %359 : vector<8x64xf32>
    %362 = arith.addf %360, %361 : vector<8x64xf32>
    %363 = math.tanh %362 : vector<8x64xf32>
    %364 = arith.mulf %357, %363 : vector<8x64xf32>
    %c56_133 = arith.constant 56 : index
    %c0_134 = arith.constant 0 : index
    %365 = vector.load %arg11[%c56_133, %c0_134] : memref<64x256xf32, #tpu.memory_space<vmem>>, vector<8x256xf32>
    %366 = arith.truncf %364 : vector<8x64xf32> to vector<8x64xbf16>
    %cst_135 = arith.constant dense<0.000000e+00> : vector<8x256xf32>
    %367 = tpu.matmul %366, %197, %cst_135 {dimension_numbers = #tpu.dot_dimension_numbers<[1], [0], [0], [1], [0, 0, 1, 1], [], []>} : vector<8x64xbf16>, vector<64x256xbf16>, vector<8x256xf32> -> vector<8x256xf32>
    %368 = arith.addf %365, %367 : vector<8x256xf32>
    %c0_136 = arith.constant 0 : index
    %c0_137 = arith.constant 0 : index
    %369 = vector.load %arg12[%c0_136, %c0_137] : memref<64x256xf32, #tpu.memory_space<vmem>>, vector<8x256xf32>
    %370 = arith.addf %368, %369 : vector<8x256xf32>
    %371 = vector.extract_strided_slice %370 {offsets = [0, 0], sizes = [8, 192], strides = [1, 1]} : vector<8x256xf32> to vector<8x192xf32>
    %372 = arith.negf %371 : vector<8x192xf32>
    %373 = math.exp %372 : vector<8x192xf32>
    %cst_138 = arith.constant 1.000000e+00 : f32
    %374 = vector.broadcast %cst_138 : f32 to vector<8x192xf32>
    %375 = arith.addf %374, %373 : vector<8x192xf32>
    %376 = arith.divf %374, %375 : vector<8x192xf32>
    %377 = vector.extract_strided_slice %376 {offsets = [0, 0], sizes = [8, 64], strides = [1, 1]} : vector<8x192xf32> to vector<8x64xf32>
    %378 = vector.extract_strided_slice %376 {offsets = [0, 64], sizes = [8, 64], strides = [1, 1]} : vector<8x192xf32> to vector<8x64xf32>
    %379 = vector.extract_strided_slice %376 {offsets = [0, 128], sizes = [8, 64], strides = [1, 1]} : vector<8x192xf32> to vector<8x64xf32>
    %380 = vector.extract_strided_slice %370 {offsets = [0, 192], sizes = [8, 64], strides = [1, 1]} : vector<8x256xf32> to vector<8x64xf32>
    %381 = math.tanh %380 : vector<8x64xf32>
    %382 = arith.mulf %378, %362 : vector<8x64xf32>
    %383 = arith.mulf %377, %381 : vector<8x64xf32>
    %384 = arith.addf %382, %383 : vector<8x64xf32>
    %385 = math.tanh %384 : vector<8x64xf32>
    %386 = arith.mulf %379, %385 : vector<8x64xf32>
    %387 = tpu.iota {dimensions = array<i32: 1>} : vector<8x64xi32>
    %c32_i32 = arith.constant 32 : i32
    %388 = vector.broadcast %c32_i32 : i32 to vector<8x64xi32>
    %389 = arith.cmpi slt, %387, %388 : vector<8x64xi32>
    %390 = arith.select %389, %386, %232 : vector<8x64xi1>, vector<8x64xf32>
    %c0_139 = arith.constant 0 : index
    %c0_140 = arith.constant 0 : index
    %391 = vector.load %arg9[%c0_139, %c0_140] : memref<8x64xf32, #tpu.memory_space<vmem>>, vector<8x64xf32>
    tpu.vector_store %arg9[%c0_139, %c0_140], %390 {strides = array<i32>} : memref<8x64xf32, #tpu.memory_space<vmem>>, vector<8x64xf32>,
    return
  }
}

</mosaic_0001>

<llo_original>
// kernel: lstm_pallas_forward.1
$region0: #{lstm_pallas_forward.1}
  #allocation0 [shape = 'u32[]', space=smem, size = 0x4, offset = 0x4, fixed_abs, tag = 'smem constant byte address 0x4 - core index']
  #allocation1 [shape = 'u32[144,128]{1,0:T(1,128)}', space=vmem, size = 0x12000, scoped, tag = 'internal scratch']
  #allocation2 [shape = 'f32[64,64]{1,0:T(8,128)}', space=vmem, size = 0x8000, scoped, tag = 'scratch operand']
  #allocation3 [shape = 'f32[64,256]{1,0:T(8,128)}', space=vmem, size = 0x10000, scoped, tag = 'scratch operand']
  #allocation4 [shape = 'f32[64,256]{1,0:T(8,128)}', space=vmem, size = 0x10000, scoped, tag = 'scratch operand']
  %s0 = inlined_call_operand.vmem [shape: bf16[64,16], index: 0, kind: input, shape index: {}]
  %s1 = inlined_call_operand.hbm [shape: bf16[16,256], index: 1, kind: input, shape index: {}]
  %s2 = inlined_call_operand.hbm [shape: bf16[16,256], index: 2, kind: input, shape index: {}]
  %s3 = inlined_call_operand.vmem [shape: bf16[64,256], index: 3, kind: input, shape index: {}]
  %s4 = inlined_call_operand.vmem [shape: f32[1,256], index: 4, kind: input, shape index: {}]
  %s5 = inlined_call_operand.vmem [shape: bf16[64,256], index: 5, kind: input, shape index: {}]
  %s6 = inlined_call_operand.hbm [shape: bf16[64,256], index: 6, kind: input, shape index: {}]
  %s7 = inlined_call_operand.hbm [shape: bf16[64,256], index: 7, kind: input, shape index: {}]
  %s8 = inlined_call_operand.vmem [shape: f32[1,256], index: 8, kind: input, shape index: {}]
  %s9 = inlined_call_operand.vmem [shape: f32[8,64], index: 9, kind: output, shape index: {}]
  %s10 = sld [smem:[#allocation0]]
  $region62: #{lstm_pallas_forward.1} parent=0
    _
  %s12 = ssub.s32 1, %s10
  %s13 = scalar_select 0, %s12, %s10
  $region1: #{lstm_pallas_forward.1} parent=0
    #allocation5 [shape = 'u8[8192]{0}', space=vmem, size = 0x2000, scoped, tag = 'input window, operand 1, single buffered']
    #allocation6 [shape = 's32[1]{0}', space=sflag, size = 0x4, scoped, tag = 'scoped memory for lstm_pallas_forward.1']
    #allocation7 [shape = 'u8[8192]{0}', space=vmem, size = 0x2000, scoped, tag = 'input window, operand 2, single buffered']
    #allocation8 [shape = 's32[1]{0}', space=sflag, size = 0x4, scoped, tag = 'scoped memory for lstm_pallas_forward.1']
    #allocation9 [shape = 'u8[32768]{0}', space=vmem, size = 0x8000, scoped, tag = 'input window, operand 6, single buffered']
    #allocation10 [shape = 'u8[32768]{0}', space=vmem, size = 0x8000, scoped, tag = 'input window, operand 7, single buffered']
    #allocation11 [shape = 's32[1]{0}', space=sflag, size = 0x4, scoped, tag = 'scoped memory for lstm_pallas_forward.1']
    %14 = vsyncpa [#allocation6], 0
    %15 = vsyncpa [#allocation8], 0
    %16 = vsyncpa [#allocation11], 0
    // Predicated region
    $region2: #{lstm_pallas_forward.1} parent=1 // pred_check
      _
    $region3: #{lstm_pallas_forward.1} parent=1 // pred_check_branch
      %18 = sbr.rel (0) target = $region5
    $region4: #{lstm_pallas_forward.1} parent=1 // pred_region
      _
    $region5: #{lstm_pallas_forward.1} parent=1 // pred_fallthru
      _
    // Predicated region
    $region6: #{lstm_pallas_forward.1} parent=1 // pred_check
      _
    $region7: #{lstm_pallas_forward.1} parent=1 // pred_check_branch
      %20 = sbr.rel (0) target = $region9
    $region8: #{lstm_pallas_forward.1} parent=1 // pred_region
      %s22 = ssub.s32 256, 256
      %23 = vsyncadd [#allocation6], %s22
      %s24 = sshll.u32 [#allocation5], 4
      %s25 = int_to_ptr.vmem [resolvable:$true] %s24
      %30 = dma.hbm_to_vmem [thread:$0]  %s1, 256, %s25, [#allocation6], 128, 128, 8
    $region9: #{lstm_pallas_forward.1} parent=1 // pred_fallthru
      _
    // Predicated region
    $region10: #{lstm_pallas_forward.1} parent=1 // pred_check
      _
    $region11: #{lstm_pallas_forward.1} parent=1 // pred_check_branch
      %32 = sbr.rel (0) target = $region13
    $region12: #{lstm_pallas_forward.1} parent=1 // pred_region
      %s34 = ssub.s32 256, 256
      %35 = vsyncadd [#allocation8], %s34
      %s36 = sshll.u32 [#allocation7], 4
      %s37 = int_to_ptr.vmem [resolvable:$true] %s36
      %42 = dma.hbm_to_vmem [thread:$0]  %s2, 256, %s37, [#allocation8], 128, 128, 8
    $region13: #{lstm_pallas_forward.1} parent=1 // pred_fallthru
      _
    // Predicated region
    $region14: #{lstm_pallas_forward.1} parent=1 // pred_check
      _
    $region15: #{lstm_pallas_forward.1} parent=1 // pred_check_branch
      %44 = sbr.rel (0) target = $region17
    $region16: #{lstm_pallas_forward.1} parent=1 // pred_region
      _
    $region17: #{lstm_pallas_forward.1} parent=1 // pred_fallthru
      _
    // Predicated region
    $region18: #{lstm_pallas_forward.1} parent=1 // pred_check
      _
    $region19: #{lstm_pallas_forward.1} parent=1 // pred_check_branch
      %46 = sbr.rel (0) target = $region21
    $region20: #{lstm_pallas_forward.1} parent=1 // pred_region
      _
    $region21: #{lstm_pallas_forward.1} parent=1 // pred_fallthru
      _
    // Predicated region
    $region22: #{lstm_pallas_forward.1} parent=1 // pred_check
      _
    $region23: #{lstm_pallas_forward.1} parent=1 // pred_check_branch
      %48 = sbr.rel (0) target = $region25
    $region24: #{lstm_pallas_forward.1} parent=1 // pred_region
      _
    $region25: #{lstm_pallas_forward.1} parent=1 // pred_fallthru
      _
    // Predicated region
    $region26: #{lstm_pallas_forward.1} parent=1 // pred_check
      _
    $region27: #{lstm_pallas_forward.1} parent=1 // pred_check_branch
      %50 = sbr.rel (0) target = $region29
    $region28: #{lstm_pallas_forward.1} parent=1 // pred_region
      %s52 = ssub.s32 1024, 1024
      %53 = vsyncadd [#allocation8], %s52
      %s54 = sshll.u32 [#allocation9], 4
      %s55 = int_to_ptr.vmem [resolvable:$true] %s54
      %60 = dma.hbm_to_vmem [thread:$0]  %s6, 1024, %s55, [#allocation8], 128, 128, 8
    $region29: #{lstm_pallas_forward.1} parent=1 // pred_fallthru
      _
    // Predicated region
    $region30: #{lstm_pallas_forward.1} parent=1 // pred_check
      _
    $region31: #{lstm_pallas_forward.1} parent=1 // pred_check_branch
      %62 = sbr.rel (0) target = $region33
    $region32: #{lstm_pallas_forward.1} parent=1 // pred_region
      %s64 = ssub.s32 1024, 1024
      %65 = vsyncadd [#allocation11], %s64
      %s66 = sshll.u32 [#allocation10], 4
      %s67 = int_to_ptr.vmem [resolvable:$true] %s66
      %72 = dma.hbm_to_vmem [thread:$0]  %s7, 1024, %s67, [#allocation11], 128, 128, 8
    $region33: #{lstm_pallas_forward.1} parent=1 // pred_fallthru
      _
    // Predicated region
    $region34: #{lstm_pallas_forward.1} parent=1 // pred_check
      _
    $region35: #{lstm_pallas_forward.1} parent=1 // pred_check_branch
      %74 = sbr.rel (0) target = $region37
    $region36: #{lstm_pallas_forward.1} parent=1 // pred_region
      _
    $region37: #{lstm_pallas_forward.1} parent=1 // pred_fallthru
      _
    // Predicated region
    $region38: #{lstm_pallas_forward.1} parent=1 // pred_check
      _
    $region39: #{lstm_pallas_forward.1} parent=1 // pred_check_branch
      %76 = sbr.rel (0) target = $region41
    $region40: #{lstm_pallas_forward.1} parent=1 // pred_region
      %77 = dma.done [#allocation6], 256
    $region41: #{lstm_pallas_forward.1} parent=1 // pred_fallthru
      _
    // Predicated region
    $region42: #{lstm_pallas_forward.1} parent=1 // pred_check
      _
    $region43: #{lstm_pallas_forward.1} parent=1 // pred_check_branch
      %79 = sbr.rel (0) target = $region45
    $region44: #{lstm_pallas_forward.1} parent=1 // pred_region
      %80 = dma.done [#allocation8], 256
    $region45: #{lstm_pallas_forward.1} parent=1 // pred_fallthru
      _
    // Predicated region
    $region46: #{lstm_pallas_forward.1} parent=1 // pred_check
      _
    $region47: #{lstm_pallas_forward.1} parent=1 // pred_check_branch
      %82 = sbr.rel (0) target = $region49
    $region48: #{lstm_pallas_forward.1} parent=1 // pred_region
      %83 = dma.done [#allocation8], 1024
    $region49: #{lstm_pallas_forward.1} parent=1 // pred_fallthru
      _
    // Predicated region
    $region50: #{lstm_pallas_forward.1} parent=1 // pred_check
      _
    $region51: #{lstm_pallas_forward.1} parent=1 // pred_check_branch
      %85 = sbr.rel (0) target = $region53
    $region52: #{lstm_pallas_forward.1} parent=1 // pred_region
      %86 = dma.done [#allocation11], 1024
    $region53: #{lstm_pallas_forward.1} parent=1 // pred_fallthru
      _
    %v88 = vld [vmem:[%s3] sm:$0xff]
    %v89 = vld [vmem:[%s3 + $0x8] sm:$0xff]
    %v90 = vld [vmem:[%s3 + $0x10] sm:$0xff]
    %v91 = vld [vmem:[%s3 + $0x18] sm:$0xff]
    %v92 = vld [vmem:[%s3 + $0x20] sm:$0xff]
    %v93 = vld [vmem:[%s3 + $0x28] sm:$0xff]
    %v94 = vld [vmem:[%s3 + $0x30] sm:$0xff]
    %v95 = vld [vmem:[%s3 + $0x38] sm:$0xff]
    %v96 = vld [vmem:[%s4] sm:$0x3]
    %v97 = vld [vmem:[%s0] sm:$0xf]
    %v98 = vld [vmem:[%s0 + $0x4] sm:$0xf]
    %v99 = vld [vmem:[%s0 + $0x8] sm:$0xf]
    %v100 = vld [vmem:[%s0 + $0xc] sm:$0xf]
    %v101 = vld [vmem:[%s0 + $0x10] sm:$0xf]
    %v102 = vld [vmem:[%s0 + $0x14] sm:$0xf]
    %v103 = vld [vmem:[%s0 + $0x18] sm:$0xf]
    %v104 = vld [vmem:[%s0 + $0x1c] sm:$0xf]
    %v105 = vld [vmem:[#allocation5] sm:$0xff]
    %v106 = vld [vmem:[#allocation5 + $0x8] sm:$0xff]
    %v108 = vlaneseq
    %v109 = vshrl.u32 %v108, 7
    %v110 = vsub.s32 0, %v109
    %v111 = vrot.slane %v96, %v110
    %v112 = vlaneseq
    %v113 = vshrl.u32 %v112, 7
    %v114 = vsub.s32 1, %v113
    %v115 = vrot.slane %v96, %v114
    %v126 = vunpack.c.l.b16 %v97
    %v127 = vunpack.c.l.b16 %v98
    %v128 = vunpack.c.l.b16 %v99
    %v129 = vunpack.c.l.b16 %v100
    %v130 = vunpack.c.l.b16 %v101
    %v131 = vunpack.c.l.b16 %v102
    %v132 = vunpack.c.l.b16 %v103
    %v133 = vunpack.c.l.b16 %v104
    %v134 = vpack.c.b16 %v127, %v126
    %v135 = vpack.c.b16 %v129, %v128
    %v136 = vpack.c.b16 %v131, %v130
    %v137 = vpack.c.b16 %v133, %v132
    %v140 = vunpack.c.l.b16 %v105
    %v141 = vunpack.c.h.b16 %v105
    %v142 = vunpack.c.l.b16 %v106
    %v143 = vunpack.c.h.b16 %v106
    %v144 = vpack.c.b16 %v142, %v140
    %v145 = vpack.c.b16 %v143, %v141
    %vm148 = vcmask 130048
    %v150 = vsel %vm148, %v134, 0
    %v153 = vsel %vm148, %v135, 0
    %v156 = vsel %vm148, %v136, 0
    %v159 = vsel %vm148, %v137, 0
    %161 = vmatprep.subr.bf16.mxu0 0
    %162 = vmatpush1.bf16.msra.mxu0 0
    %163 = vmatprep.subr.bf16.mxu0 0
    %164 = vmatpush1.bf16.msra.mxu0 0
    %165 = vmatprep.subr.bf16.mxu0 0
    %166 = vmatpush1.bf16.msra.mxu0 0
    %167 = vmatprep.subr.bf16.mxu0 0
    %168 = vmatpush1.bf16.msra.mxu0 0
    %169 = vmatprep.subr.bf16.mxu0 0
    %170 = vmatpush1.bf16.msra.mxu0 0
    %171 = vmatprep.subr.bf16.mxu0 0
    %172 = vmatpush1.bf16.msra.mxu0 0
    %173 = vmatprep.subr.bf16.mxu0 0
    %174 = vmatpush1.bf16.msra.mxu0 0
    %175 = vmatprep.subr.bf16.mxu0 %v145
    %176 = vmatpush1.bf16.msra.mxu0 %v144
    %177 = vmatprep.subr.bf16.mxu0 0
    %178 = vmatpush2.bf16.msra.mxu0 0
    %179 = vmatprep.subr.bf16.mxu0 0
    %180 = vmatpush2.bf16.msra.mxu0 0
    %181 = vmatprep.subr.bf16.mxu0 0
    %182 = vmatpush2.bf16.msra.mxu0 0
    %183 = vmatprep.subr.bf16.mxu0 0
    %184 = vmatpush2.bf16.msra.mxu0 0
    %185 = vmatprep.subr.bf16.mxu0 0
    %186 = vmatpush2.bf16.msra.mxu0 0
    %187 = vmatprep.subr.bf16.mxu0 0
    %188 = vmatpush2.bf16.msra.mxu0 0
    %189 = vmatprep.subr.bf16.mxu0 0
    %190 = vmatpush2.bf16.msra.mxu0 0
    %191 = vmatprep.subr.bf16.mxu0 0
    %192 = vmatpush2.bf16.msra.mxu0 0
    %193 = vmatprep.mubr.bf16.mxu0 0
    %194 = vmatmul.mubr.bf16.gmra.mxu0 %v150
    %v195 = vpop.f32.mrf.mxu0
    %v196 = vadd.f32 %v111, %v195
    %v197 = vpop.f32.mrf.mxu0
    %v198 = vadd.f32 %v115, %v197
    %v199 = vpop.f32.mrf.mxu0
    %v200 = vadd.f32 %v111, %v199
    %v201 = vpop.f32.mrf.mxu0
    %v202 = vadd.f32 %v115, %v201
    %203 = vmatprep.mubr.bf16.mxu0 0
    %204 = vmatmul.mubr.bf16.gmra.mxu0 %v153
    %v205 = vpop.f32.mrf.mxu0
    %v206 = vadd.f32 %v111, %v205
    %v207 = vpop.f32.mrf.mxu0
    %v208 = vadd.f32 %v115, %v207
    %v209 = vpop.f32.mrf.mxu0
    %v210 = vadd.f32 %v111, %v209
    %v211 = vpop.f32.mrf.mxu0
    %v212 = vadd.f32 %v115, %v211
    %213 = vmatprep.mubr.bf16.mxu0 0
    %214 = vmatmul.mubr.bf16.gmra.mxu0 %v156
    %v215 = vpop.f32.mrf.mxu0
    %v216 = vadd.f32 %v111, %v215
    %v217 = vpop.f32.mrf.mxu0
    %v218 = vadd.f32 %v115, %v217
    %v219 = vpop.f32.mrf.mxu0
    %v220 = vadd.f32 %v111, %v219
    %v221 = vpop.f32.mrf.mxu0
    %v222 = vadd.f32 %v115, %v221
    %223 = vmatprep.mubr.bf16.mxu0 0
    %224 = vmatmul.mubr.bf16.gmra.mxu0 %v159
    %v225 = vpop.f32.mrf.mxu0
    %v226 = vadd.f32 %v111, %v225
    %v227 = vpop.f32.mrf.mxu0
    %v228 = vadd.f32 %v115, %v227
    %v229 = vpop.f32.mrf.mxu0
    %v230 = vadd.f32 %v111, %v229
    %v231 = vpop.f32.mrf.mxu0
    %v232 = vadd.f32 %v115, %v231
    %233 = vdwg.mxu0
    %234 = vst [vmem:[#allocation3] sm:$0xff] %v196
    %235 = vst [vmem:[#allocation3 + $0x8] sm:$0xff] %v198
    %236 = vst [vmem:[#allocation3 + $0x10] sm:$0xff] %v200
    %237 = vst [vmem:[#allocation3 + $0x18] sm:$0xff] %v202
    %238 = vst [vmem:[#allocation3 + $0x20] sm:$0xff] %v206
    %239 = vst [vmem:[#allocation3 + $0x28] sm:$0xff] %v208
    %240 = vst [vmem:[#allocation3 + $0x30] sm:$0xff] %v210
    %241 = vst [vmem:[#allocation3 + $0x38] sm:$0xff] %v212
    %242 = vst [vmem:[#allocation3 + $0x40] sm:$0xff] %v216
    %243 = vst [vmem:[#allocation3 + $0x48] sm:$0xff] %v218
    %244 = vst [vmem:[#allocation3 + $0x50] sm:$0xff] %v220
    %245 = vst [vmem:[#allocation3 + $0x58] sm:$0xff] %v222
    %246 = vst [vmem:[#allocation3 + $0x60] sm:$0xff] %v226
    %247 = vst [vmem:[#allocation3 + $0x68] sm:$0xff] %v228
    %248 = vst [vmem:[#allocation3 + $0x70] sm:$0xff] %v230
    %249 = vst [vmem:[#allocation3 + $0x78] sm:$0xff] %v232
    %v250 = vld [vmem:[#allocation7] sm:$0xff]
    %v251 = vld [vmem:[#allocation7 + $0x8] sm:$0xff]
    %v254 = vunpack.c.l.b16 %v250
    %v255 = vunpack.c.h.b16 %v250
    %v256 = vunpack.c.l.b16 %v251
    %v257 = vunpack.c.h.b16 %v251
    %v258 = vpack.c.b16 %v256, %v254
    %v259 = vpack.c.b16 %v257, %v255
    %262 = vmatprep.subr.bf16.mxu0 0
    %263 = vmatpush1.bf16.msra.mxu0 0
    %264 = vmatprep.subr.bf16.mxu0 0
    %265 = vmatpush1.bf16.msra.mxu0 0
    %266 = vmatprep.subr.bf16.mxu0 0
    %267 = vmatpush1.bf16.msra.mxu0 0
    %268 = vmatprep.subr.bf16.mxu0 0
    %269 = vmatpush1.bf16.msra.mxu0 0
    %270 = vmatprep.subr.bf16.mxu0 0
    %271 = vmatpush1.bf16.msra.mxu0 0
    %272 = vmatprep.subr.bf16.mxu0 0
    %273 = vmatpush1.bf16.msra.mxu0 0
    %274 = vmatprep.subr.bf16.mxu0 0
    %275 = vmatpush1.bf16.msra.mxu0 0
    %276 = vmatprep.subr.bf16.mxu0 %v259
    %277 = vmatpush1.bf16.msra.mxu0 %v258
    %278 = vmatprep.subr.bf16.mxu0 0
    %279 = vmatpush2.bf16.msra.mxu0 0
    %280 = vmatprep.subr.bf16.mxu0 0
    %281 = vmatpush2.bf16.msra.mxu0 0
    %282 = vmatprep.subr.bf16.mxu0 0
    %283 = vmatpush2.bf16.msra.mxu0 0
    %284 = vmatprep.subr.bf16.mxu0 0
    %285 = vmatpush2.bf16.msra.mxu0 0
    %286 = vmatprep.subr.bf16.mxu0 0
    %287 = vmatpush2.bf16.msra.mxu0 0
    %288 = vmatprep.subr.bf16.mxu0 0
    %289 = vmatpush2.bf16.msra.mxu0 0
    %290 = vmatprep.subr.bf16.mxu0 0
    %291 = vmatpush2.bf16.msra.mxu0 0
    %292 = vmatprep.subr.bf16.mxu0 0
    %293 = vmatpush2.bf16.msra.mxu0 0
    %294 = vmatprep.mubr.bf16.mxu0 0
    %295 = vmatmul.mubr.bf16.gmra.mxu0 %v150
    %v296 = vpop.f32.mrf.mxu0
    %v297 = vadd.f32 0.0, %v296
    %v298 = vpop.f32.mrf.mxu0
    %v299 = vadd.f32 0.0, %v298
    %v300 = vpop.f32.mrf.mxu0
    %v301 = vadd.f32 0.0, %v300
    %v302 = vpop.f32.mrf.mxu0
    %v303 = vadd.f32 0.0, %v302
    %304 = vmatprep.mubr.bf16.mxu0 0
    %305 = vmatmul.mubr.bf16.gmra.mxu0 %v153
    %v306 = vpop.f32.mrf.mxu0
    %v307 = vadd.f32 0.0, %v306
    %v308 = vpop.f32.mrf.mxu0
    %v309 = vadd.f32 0.0, %v308
    %v310 = vpop.f32.mrf.mxu0
    %v311 = vadd.f32 0.0, %v310
    %v312 = vpop.f32.mrf.mxu0
    %v313 = vadd.f32 0.0, %v312
    %314 = vmatprep.mubr.bf16.mxu0 0
    %315 = vmatmul.mubr.bf16.gmra.mxu0 %v156
    %v316 = vpop.f32.mrf.mxu0
    %v317 = vadd.f32 0.0, %v316
    %v318 = vpop.f32.mrf.mxu0
    %v319 = vadd.f32 0.0, %v318
    %v320 = vpop.f32.mrf.mxu0
    %v321 = vadd.f32 0.0, %v320
    %v322 = vpop.f32.mrf.mxu0
    %v323 = vadd.f32 0.0, %v322
    %324 = vmatprep.mubr.bf16.mxu0 0
    %325 = vmatmul.mubr.bf16.gmra.mxu0 %v159
    %v326 = vpop.f32.mrf.mxu0
    %v327 = vadd.f32 0.0, %v326
    %v328 = vpop.f32.mrf.mxu0
    %v329 = vadd.f32 0.0, %v328
    %v330 = vpop.f32.mrf.mxu0
    %v331 = vadd.f32 0.0, %v330
    %v332 = vpop.f32.mrf.mxu0
    %v333 = vadd.f32 0.0, %v332
    %334 = vdwg.mxu0
    %335 = vst [vmem:[#allocation4] sm:$0xff] %v297
    %336 = vst [vmem:[#allocation4 + $0x8] sm:$0xff] %v299
    %337 = vst [vmem:[#allocation4 + $0x10] sm:$0xff] %v301
    %338 = vst [vmem:[#allocation4 + $0x18] sm:$0xff] %v303
    %339 = vst [vmem:[#allocation4 + $0x20] sm:$0xff] %v307
    %340 = vst [vmem:[#allocation4 + $0x28] sm:$0xff] %v309
    %341 = vst [vmem:[#allocation4 + $0x30] sm:$0xff] %v311
    %342 = vst [vmem:[#allocation4 + $0x38] sm:$0xff] %v313
    %343 = vst [vmem:[#allocation4 + $0x40] sm:$0xff] %v317
    %344 = vst [vmem:[#allocation4 + $0x48] sm:$0xff] %v319
    %345 = vst [vmem:[#allocation4 + $0x50] sm:$0xff] %v321
    %346 = vst [vmem:[#allocation4 + $0x58] sm:$0xff] %v323
    %347 = vst [vmem:[#allocation4 + $0x60] sm:$0xff] %v327
    %348 = vst [vmem:[#allocation4 + $0x68] sm:$0xff] %v329
    %349 = vst [vmem:[#allocation4 + $0x70] sm:$0xff] %v331
    %350 = vst [vmem:[#allocation4 + $0x78] sm:$0xff] %v333
    %v351 = vld [vmem:[#allocation3] sm:$0xff]
    %v352 = vld [vmem:[#allocation3 + $0x8] sm:$0xff]
    %v361 = vunpack.c.l.b16 %v88
    %v362 = vunpack.c.h.b16 %v88
    %v363 = vunpack.c.l.b16 %v89
    %v364 = vunpack.c.h.b16 %v89
    %v365 = vunpack.c.l.b16 %v90
    %v366 = vunpack.c.h.b16 %v90
    %v367 = vunpack.c.l.b16 %v91
    %v368 = vunpack.c.h.b16 %v91
    %v369 = vunpack.c.l.b16 %v92
    %v370 = vunpack.c.h.b16 %v92
    %v371 = vunpack.c.l.b16 %v93
    %v372 = vunpack.c.h.b16 %v93
    %v373 = vunpack.c.l.b16 %v94
    %v374 = vunpack.c.h.b16 %v94
    %v375 = vunpack.c.l.b16 %v95
    %v376 = vunpack.c.h.b16 %v95
    %v377 = vpack.c.b16 %v363, %v361
    %v378 = vpack.c.b16 %v364, %v362
    %v379 = vpack.c.b16 %v367, %v365
    %v380 = vpack.c.b16 %v368, %v366
    %v381 = vpack.c.b16 %v371, %v369
    %v382 = vpack.c.b16 %v372, %v370
    %v383 = vpack.c.b16 %v375, %v373
    %v384 = vpack.c.b16 %v376, %v374
    %vm393 = vcmask 523264
    %v395 = vsel %vm393, 0, 0
    %397 = vmatprep.subr.bf16.mxu0 0
    %398 = vmatpush1.bf16.msra.mxu0 0
    %399 = vmatprep.subr.bf16.mxu0 0
    %400 = vmatpush1.bf16.msra.mxu0 0
    %401 = vmatprep.subr.bf16.mxu0 0
    %402 = vmatpush1.bf16.msra.mxu0 0
    %403 = vmatprep.subr.bf16.mxu0 0
    %404 = vmatpush1.bf16.msra.mxu0 0
    %405 = vmatprep.subr.bf16.mxu0 %v384
    %406 = vmatpush1.bf16.msra.mxu0 %v383
    %407 = vmatprep.subr.bf16.mxu0 %v382
    %408 = vmatpush1.bf16.msra.mxu0 %v381
    %409 = vmatprep.subr.bf16.mxu0 %v380
    %410 = vmatpush1.bf16.msra.mxu0 %v379
    %411 = vmatprep.subr.bf16.mxu0 %v378
    %412 = vmatpush1.bf16.msra.mxu0 %v377
    %413 = vmatprep.subr.bf16.mxu0 0
    %414 = vmatpush2.bf16.msra.mxu0 0
    %415 = vmatprep.subr.bf16.mxu0 0
    %416 = vmatpush2.bf16.msra.mxu0 0
    %417 = vmatprep.subr.bf16.mxu0 0
    %418 = vmatpush2.bf16.msra.mxu0 0
    %419 = vmatprep.subr.bf16.mxu0 0
    %420 = vmatpush2.bf16.msra.mxu0 0
    %421 = vmatprep.subr.bf16.mxu0 0
    %422 = vmatpush2.bf16.msra.mxu0 0
    %423 = vmatprep.subr.bf16.mxu0 0
    %424 = vmatpush2.bf16.msra.mxu0 0
    %425 = vmatprep.subr.bf16.mxu0 0
    %426 = vmatpush2.bf16.msra.mxu0 0
    %427 = vmatprep.subr.bf16.mxu0 0
    %428 = vmatpush2.bf16.msra.mxu0 0
    %429 = vmatprep.mubr.bf16.mxu0 0
    %430 = vmatmul.mubr.bf16.gmra.mxu0 %v395
    %v431 = vpop.f32.mrf.mxu0
    %v432 = vadd.f32 0.0, %v431
    %v433 = vpop.f32.mrf.mxu0
    %v434 = vadd.f32 0.0, %v433
    %v435 = vpop.f32.mrf.mxu0
    %v436 = vpop.f32.mrf.mxu0
    %437 = vdwg.mxu0
    %v438 = vadd.f32 %v351, %v432
    %v439 = vadd.f32 %v352, %v434
    %v440 = vld [vmem:[#allocation4 + $0x70] sm:$0xff]
    %v441 = vld [vmem:[#allocation4 + $0x78] sm:$0xff]
    %v442 = vadd.f32 %v438, %v440
    %v443 = vadd.f32 %v439, %v441
    %v444 = vxor.u32 %v442, 2147483648
    %v445 = vxor.u32 %v443, 2147483648
    %v446 = vmul.f32 %v444, 1.442695
    %v447 = vpow.pop %v446
    %v448 = vmul.f32 %v445, 1.442695
    %v449 = vpow.pop %v448
    %v450 = vadd.f32 %v447, 1.0
    %v451 = vadd.f32 %v449, 1.0
    %v452 = vrcp.pop %v450
    %v453 = vmul.f32 1.0, %v452
    %v454 = vrcp.pop %v451
    %v455 = vmul.f32 1.0, %v454
    %v456 = vtanh.pop %v443
    %v457 = vmul.f32 %v453, 0.0
    %459 = vrot.lane.b32.xlu0 %v456, 64
    %v460 = vpop.permute.xlu0 %459
    %v462 = vmul.f32 %v453, %v460
    %464 = vrot.lane.b32.xlu0 %v462, 64
    %v465 = vpop.permute.xlu0 %464
    %v467 = vadd.f32 %v457, %v465
    %v468 = vtanh.pop %v467
    %470 = vrot.lane.b32.xlu0 %v468, 64
    %v471 = vpop.permute.xlu0 %470
    %v473 = vmul.f32 %v455, %v471
    %474 = vst.msk [vmem:[#allocation2] sm:$0xff] %vm393, %v473
    %v475 = vld [vmem:[#allocation3 + $0x10] sm:$0xff]
    %v476 = vld [vmem:[#allocation3 + $0x18] sm:$0xff]
    %v477 = vpack.c.bf16 %v473, %v473
    %v479 = vsel %vm393, %v477, 0
    %481 = vmatprep.subr.bf16.mxu0 0
    %482 = vmatpush1.bf16.msra.mxu0 0
    %483 = vmatprep.subr.bf16.mxu0 0
    %484 = vmatpush1.bf16.msra.mxu0 0
    %485 = vmatprep.subr.bf16.mxu0 0
    %486 = vmatpush1.bf16.msra.mxu0 0
    %487 = vmatprep.subr.bf16.mxu0 0
    %488 = vmatpush1.bf16.msra.mxu0 0
    %489 = vmatprep.subr.bf16.mxu0 %v384
    %490 = vmatpush1.bf16.msra.mxu0 %v383
    %491 = vmatprep.subr.bf16.mxu0 %v382
    %492 = vmatpush1.bf16.msra.mxu0 %v381
    %493 = vmatprep.subr.bf16.mxu0 %v380
    %494 = vmatpush1.bf16.msra.mxu0 %v379
    %495 = vmatprep.subr.bf16.mxu0 %v378
    %496 = vmatpush1.bf16.msra.mxu0 %v377
    %497 = vmatprep.subr.bf16.mxu0 0
    %498 = vmatpush2.bf16.msra.mxu0 0
    %499 = vmatprep.subr.bf16.mxu0 0
    %500 = vmatpush2.bf16.msra.mxu0 0
    %501 = vmatprep.subr.bf16.mxu0 0
    %502 = vmatpush2.bf16.msra.mxu0 0
    %503 = vmatprep.subr.bf16.mxu0 0
    %504 = vmatpush2.bf16.msra.mxu0 0
    %505 = vmatprep.subr.bf16.mxu0 0
    %506 = vmatpush2.bf16.msra.mxu0 0
    %507 = vmatprep.subr.bf16.mxu0 0
    %508 = vmatpush2.bf16.msra.mxu0 0
    %509 = vmatprep.subr.bf16.mxu0 0
    %510 = vmatpush2.bf16.msra.mxu0 0
    %511 = vmatprep.subr.bf16.mxu0 0
    %512 = vmatpush2.bf16.msra.mxu0 0
    %513 = vmatprep.mubr.bf16.mxu0 0
    %514 = vmatmul.mubr.bf16.gmra.mxu0 %v479
    %v515 = vpop.f32.mrf.mxu0
    %v516 = vadd.f32 0.0, %v515
    %v517 = vpop.f32.mrf.mxu0
    %v518 = vadd.f32 0.0, %v517
    %v519 = vpop.f32.mrf.mxu0
    %v520 = vpop.f32.mrf.mxu0
    %521 = vdwg.mxu0
    %v522 = vadd.f32 %v475, %v516
    %v523 = vadd.f32 %v476, %v518
    %v524 = vld [vmem:[#allocation4 + $0x60] sm:$0xff]
    %v525 = vld [vmem:[#allocation4 + $0x68] sm:$0xff]
    %v526 = vadd.f32 %v522, %v524
    %v527 = vadd.f32 %v523, %v525
    %v528 = vxor.u32 %v526, 2147483648
    %v529 = vxor.u32 %v527, 2147483648
    %v530 = vmul.f32 %v528, 1.442695
    %v531 = vpow.pop %v530
    %v532 = vmul.f32 %v529, 1.442695
    %v533 = vpow.pop %v532
    %v534 = vadd.f32 %v531, 1.0
    %v535 = vadd.f32 %v533, 1.0
    %v536 = vrcp.pop %v534
    %v537 = vmul.f32 1.0, %v536
    %v538 = vrcp.pop %v535
    %v539 = vmul.f32 1.0, %v538
    %v540 = vtanh.pop %v527
    %v541 = vmul.f32 %v537, %v467
    %543 = vrot.lane.b32.xlu0 %v540, 64
    %v544 = vpop.permute.xlu0 %543
    %v546 = vmul.f32 %v537, %v544
    %548 = vrot.lane.b32.xlu0 %v546, 64
    %v549 = vpop.permute.xlu0 %548
    %v551 = vadd.f32 %v541, %v549
    %v552 = vtanh.pop %v551
    %554 = vrot.lane.b32.xlu0 %v552, 64
    %v555 = vpop.permute.xlu0 %554
    %v557 = vmul.f32 %v539, %v555
    %558 = vst.msk [vmem:[#allocation2 + $0x8] sm:$0xff] %vm393, %v557
    %v559 = vld [vmem:[#allocation3 + $0x20] sm:$0xff]
    %v560 = vld [vmem:[#allocation3 + $0x28] sm:$0xff]
    %v561 = vpack.c.bf16 %v557, %v557
    %v563 = vsel %vm393, %v561, 0
    %565 = vmatprep.subr.bf16.mxu0 0
    %566 = vmatpush1.bf16.msra.mxu0 0
    %567 = vmatprep.subr.bf16.mxu0 0
    %568 = vmatpush1.bf16.msra.mxu0 0
    %569 = vmatprep.subr.bf16.mxu0 0
    %570 = vmatpush1.bf16.msra.mxu0 0
    %571 = vmatprep.subr.bf16.mxu0 0
    %572 = vmatpush1.bf16.msra.mxu0 0
    %573 = vmatprep.subr.bf16.mxu0 %v384
    %574 = vmatpush1.bf16.msra.mxu0 %v383
    %575 = vmatprep.subr.bf16.mxu0 %v382
    %576 = vmatpush1.bf16.msra.mxu0 %v381
    %577 = vmatprep.subr.bf16.mxu0 %v380
    %578 = vmatpush1.bf16.msra.mxu0 %v379
    %579 = vmatprep.subr.bf16.mxu0 %v378
    %580 = vmatpush1.bf16.msra.mxu0 %v377
    %581 = vmatprep.subr.bf16.mxu0 0
    %582 = vmatpush2.bf16.msra.mxu0 0
    %583 = vmatprep.subr.bf16.mxu0 0
    %584 = vmatpush2.bf16.msra.mxu0 0
    %585 = vmatprep.subr.bf16.mxu0 0
    %586 = vmatpush2.bf16.msra.mxu0 0
    %587 = vmatprep.subr.bf16.mxu0 0
    %588 = vmatpush2.bf16.msra.mxu0 0
    %589 = vmatprep.subr.bf16.mxu0 0
    %590 = vmatpush2.bf16.msra.mxu0 0
    %591 = vmatprep.subr.bf16.mxu0 0
    %592 = vmatpush2.bf16.msra.mxu0 0
    %593 = vmatprep.subr.bf16.mxu0 0
    %594 = vmatpush2.bf16.msra.mxu0 0
    %595 = vmatprep.subr.bf16.mxu0 0
    %596 = vmatpush2.bf16.msra.mxu0 0
    %597 = vmatprep.mubr.bf16.mxu0 0
    %598 = vmatmul.mubr.bf16.gmra.mxu0 %v563
    %v599 = vpop.f32.mrf.mxu0
    %v600 = vadd.f32 0.0, %v599
    %v601 = vpop.f32.mrf.mxu0
    %v602 = vadd.f32 0.0, %v601
    %v603 = vpop.f32.mrf.mxu0
    %v604 = vpop.f32.mrf.mxu0
    %605 = vdwg.mxu0
    %v606 = vadd.f32 %v559, %v600
    %v607 = vadd.f32 %v560, %v602
    %v608 = vld [vmem:[#allocation4 + $0x50] sm:$0xff]
    %v609 = vld [vmem:[#allocation4 + $0x58] sm:$0xff]
    %v610 = vadd.f32 %v606, %v608
    %v611 = vadd.f32 %v607, %v609
    %v612 = vxor.u32 %v610, 2147483648
    %v613 = vxor.u32 %v611, 2147483648
    %v614 = vmul.f32 %v612, 1.442695
    %v615 = vpow.pop %v614
    %v616 = vmul.f32 %v613, 1.442695
    %v617 = vpow.pop %v616
    %v618 = vadd.f32 %v615, 1.0
    %v619 = vadd.f32 %v617, 1.0
    %v620 = vrcp.pop %v618
    %v621 = vmul.f32 1.0, %v620
    %v622 = vrcp.pop %v619
    %v623 = vmul.f32 1.0, %v622
    %v624 = vtanh.pop %v611
    %v625 = vmul.f32 %v621, %v551
    %627 = vrot.lane.b32.xlu0 %v624, 64
    %v628 = vpop.permute.xlu0 %627
    %v630 = vmul.f32 %v621, %v628
    %632 = vrot.lane.b32.xlu0 %v630, 64
    %v633 = vpop.permute.xlu0 %632
    %v635 = vadd.f32 %v625, %v633
    %v636 = vtanh.pop %v635
    %638 = vrot.lane.b32.xlu0 %v636, 64
    %v639 = vpop.permute.xlu0 %638
    %v641 = vmul.f32 %v623, %v639
    %642 = vst.msk [vmem:[#allocation2 + $0x10] sm:$0xff] %vm393, %v641
    %v643 = vld [vmem:[#allocation3 + $0x30] sm:$0xff]
    %v644 = vld [vmem:[#allocation3 + $0x38] sm:$0xff]
    %v645 = vpack.c.bf16 %v641, %v641
    %v647 = vsel %vm393, %v645, 0
    %649 = vmatprep.subr.bf16.mxu0 0
    %650 = vmatpush1.bf16.msra.mxu0 0
    %651 = vmatprep.subr.bf16.mxu0 0
    %652 = vmatpush1.bf16.msra.mxu0 0
    %653 = vmatprep.subr.bf16.mxu0 0
    %654 = vmatpush1.bf16.msra.mxu0 0
    %655 = vmatprep.subr.bf16.mxu0 0
    %656 = vmatpush1.bf16.msra.mxu0 0
    %657 = vmatprep.subr.bf16.mxu0 %v384
    %658 = vmatpush1.bf16.msra.mxu0 %v383
    %659 = vmatprep.subr.bf16.mxu0 %v382
    %660 = vmatpush1.bf16.msra.mxu0 %v381
    %661 = vmatprep.subr.bf16.mxu0 %v380
    %662 = vmatpush1.bf16.msra.mxu0 %v379
    %663 = vmatprep.subr.bf16.mxu0 %v378
    %664 = vmatpush1.bf16.msra.mxu0 %v377
    %665 = vmatprep.subr.bf16.mxu0 0
    %666 = vmatpush2.bf16.msra.mxu0 0
    %667 = vmatprep.subr.bf16.mxu0 0
    %668 = vmatpush2.bf16.msra.mxu0 0
    %669 = vmatprep.subr.bf16.mxu0 0
    %670 = vmatpush2.bf16.msra.mxu0 0
    %671 = vmatprep.subr.bf16.mxu0 0
    %672 = vmatpush2.bf16.msra.mxu0 0
    %673 = vmatprep.subr.bf16.mxu0 0
    %674 = vmatpush2.bf16.msra.mxu0 0
    %675 = vmatprep.subr.bf16.mxu0 0
    %676 = vmatpush2.bf16.msra.mxu0 0
    %677 = vmatprep.subr.bf16.mxu0 0
    %678 = vmatpush2.bf16.msra.mxu0 0
    %679 = vmatprep.subr.bf16.mxu0 0
    %680 = vmatpush2.bf16.msra.mxu0 0
    %681 = vmatprep.mubr.bf16.mxu0 0
    %682 = vmatmul.mubr.bf16.gmra.mxu0 %v647
    %v683 = vpop.f32.mrf.mxu0
    %v684 = vadd.f32 0.0, %v683
    %v685 = vpop.f32.mrf.mxu0
    %v686 = vadd.f32 0.0, %v685
    %v687 = vpop.f32.mrf.mxu0
    %v688 = vpop.f32.mrf.mxu0
    %689 = vdwg.mxu0
    %v690 = vadd.f32 %v643, %v684
    %v691 = vadd.f32 %v644, %v686
    %v692 = vld [vmem:[#allocation4 + $0x40] sm:$0xff]
    %v693 = vld [vmem:[#allocation4 + $0x48] sm:$0xff]
    %v694 = vadd.f32 %v690, %v692
    %v695 = vadd.f32 %v691, %v693
    %v696 = vxor.u32 %v694, 2147483648
    %v697 = vxor.u32 %v695, 2147483648
    %v698 = vmul.f32 %v696, 1.442695
    %v699 = vpow.pop %v698
    %v700 = vmul.f32 %v697, 1.442695
    %v701 = vpow.pop %v700
    %v702 = vadd.f32 %v699, 1.0
    %v703 = vadd.f32 %v701, 1.0
    %v704 = vrcp.pop %v702
    %v705 = vmul.f32 1.0, %v704
    %v706 = vrcp.pop %v703
    %v707 = vmul.f32 1.0, %v706
    %v708 = vtanh.pop %v695
    %v709 = vmul.f32 %v705, %v635
    %711 = vrot.lane.b32.xlu0 %v708, 64
    %v712 = vpop.permute.xlu0 %711
    %v714 = vmul.f32 %v705, %v712
    %716 = vrot.lane.b32.xlu0 %v714, 64
    %v717 = vpop.permute.xlu0 %716
    %v719 = vadd.f32 %v709, %v717
    %v720 = vtanh.pop %v719
    %722 = vrot.lane.b32.xlu0 %v720, 64
    %v723 = vpop.permute.xlu0 %722
    %v725 = vmul.f32 %v707, %v723
    %726 = vst.msk [vmem:[#allocation2 + $0x18] sm:$0xff] %vm393, %v725
    %v727 = vld [vmem:[#allocation3 + $0x40] sm:$0xff]
    %v728 = vld [vmem:[#allocation3 + $0x48] sm:$0xff]
    %v729 = vpack.c.bf16 %v725, %v725
    %v731 = vsel %vm393, %v729, 0
    %733 = vmatprep.subr.bf16.mxu0 0
    %734 = vmatpush1.bf16.msra.mxu0 0
    %735 = vmatprep.subr.bf16.mxu0 0
    %736 = vmatpush1.bf16.msra.mxu0 0
    %737 = vmatprep.subr.bf16.mxu0 0
    %738 = vmatpush1.bf16.msra.mxu0 0
    %739 = vmatprep.subr.bf16.mxu0 0
    %740 = vmatpush1.bf16.msra.mxu0 0
    %741 = vmatprep.subr.bf16.mxu0 %v384
    %742 = vmatpush1.bf16.msra.mxu0 %v383
    %743 = vmatprep.subr.bf16.mxu0 %v382
    %744 = vmatpush1.bf16.msra.mxu0 %v381
    %745 = vmatprep.subr.bf16.mxu0 %v380
    %746 = vmatpush1.bf16.msra.mxu0 %v379
    %747 = vmatprep.subr.bf16.mxu0 %v378
    %748 = vmatpush1.bf16.msra.mxu0 %v377
    %749 = vmatprep.subr.bf16.mxu0 0
    %750 = vmatpush2.bf16.msra.mxu0 0
    %751 = vmatprep.subr.bf16.mxu0 0
    %752 = vmatpush2.bf16.msra.mxu0 0
    %753 = vmatprep.subr.bf16.mxu0 0
    %754 = vmatpush2.bf16.msra.mxu0 0
    %755 = vmatprep.subr.bf16.mxu0 0
    %756 = vmatpush2.bf16.msra.mxu0 0
    %757 = vmatprep.subr.bf16.mxu0 0
    %758 = vmatpush2.bf16.msra.mxu0 0
    %759 = vmatprep.subr.bf16.mxu0 0
    %760 = vmatpush2.bf16.msra.mxu0 0
    %761 = vmatprep.subr.bf16.mxu0 0
    %762 = vmatpush2.bf16.msra.mxu0 0
    %763 = vmatprep.subr.bf16.mxu0 0
    %764 = vmatpush2.bf16.msra.mxu0 0
    %765 = vmatprep.mubr.bf16.mxu0 0
    %766 = vmatmul.mubr.bf16.gmra.mxu0 %v731
    %v767 = vpop.f32.mrf.mxu0
    %v768 = vadd.f32 0.0, %v767
    %v769 = vpop.f32.mrf.mxu0
    %v770 = vadd.f32 0.0, %v769
    %v771 = vpop.f32.mrf.mxu0
    %v772 = vpop.f32.mrf.mxu0
    %773 = vdwg.mxu0
    %v774 = vadd.f32 %v727, %v768
    %v775 = vadd.f32 %v728, %v770
    %v776 = vld [vmem:[#allocation4 + $0x30] sm:$0xff]
    %v777 = vld [vmem:[#allocation4 + $0x38] sm:$0xff]
    %v778 = vadd.f32 %v774, %v776
    %v779 = vadd.f32 %v775, %v777
    %v780 = vxor.u32 %v778, 2147483648
    %v781 = vxor.u32 %v779, 2147483648
    %v782 = vmul.f32 %v780, 1.442695
    %v783 = vpow.pop %v782
    %v784 = vmul.f32 %v781, 1.442695
    %v785 = vpow.pop %v784
    %v786 = vadd.f32 %v783, 1.0
    %v787 = vadd.f32 %v785, 1.0
    %v788 = vrcp.pop %v786
    %v789 = vmul.f32 1.0, %v788
    %v790 = vrcp.pop %v787
    %v791 = vmul.f32 1.0, %v790
    %v792 = vtanh.pop %v779
    %v793 = vmul.f32 %v789, %v719
    %795 = vrot.lane.b32.xlu0 %v792, 64
    %v796 = vpop.permute.xlu0 %795
    %v798 = vmul.f32 %v789, %v796
    %800 = vrot.lane.b32.xlu0 %v798, 64
    %v801 = vpop.permute.xlu0 %800
    %v803 = vadd.f32 %v793, %v801
    %v804 = vtanh.pop %v803
    %806 = vrot.lane.b32.xlu0 %v804, 64
    %v807 = vpop.permute.xlu0 %806
    %v809 = vmul.f32 %v791, %v807
    %810 = vst.msk [vmem:[#allocation2 + $0x20] sm:$0xff] %vm393, %v809
    %v811 = vld [vmem:[#allocation3 + $0x50] sm:$0xff]
    %v812 = vld [vmem:[#allocation3 + $0x58] sm:$0xff]
    %v813 = vpack.c.bf16 %v809, %v809
    %v815 = vsel %vm393, %v813, 0
    %817 = vmatprep.subr.bf16.mxu0 0
    %818 = vmatpush1.bf16.msra.mxu0 0
    %819 = vmatprep.subr.bf16.mxu0 0
    %820 = vmatpush1.bf16.msra.mxu0 0
    %821 = vmatprep.subr.bf16.mxu0 0
    %822 = vmatpush1.bf16.msra.mxu0 0
    %823 = vmatprep.subr.bf16.mxu0 0
    %824 = vmatpush1.bf16.msra.mxu0 0
    %825 = vmatprep.subr.bf16.mxu0 %v384
    %826 = vmatpush1.bf16.msra.mxu0 %v383
    %827 = vmatprep.subr.bf16.mxu0 %v382
    %828 = vmatpush1.bf16.msra.mxu0 %v381
    %829 = vmatprep.subr.bf16.mxu0 %v380
    %830 = vmatpush1.bf16.msra.mxu0 %v379
    %831 = vmatprep.subr.bf16.mxu0 %v378
    %832 = vmatpush1.bf16.msra.mxu0 %v377
    %833 = vmatprep.subr.bf16.mxu0 0
    %834 = vmatpush2.bf16.msra.mxu0 0
    %835 = vmatprep.subr.bf16.mxu0 0
    %836 = vmatpush2.bf16.msra.mxu0 0
    %837 = vmatprep.subr.bf16.mxu0 0
    %838 = vmatpush2.bf16.msra.mxu0 0
    %839 = vmatprep.subr.bf16.mxu0 0
    %840 = vmatpush2.bf16.msra.mxu0 0
    %841 = vmatprep.subr.bf16.mxu0 0
    %842 = vmatpush2.bf16.msra.mxu0 0
    %843 = vmatprep.subr.bf16.mxu0 0
    %844 = vmatpush2.bf16.msra.mxu0 0
    %845 = vmatprep.subr.bf16.mxu0 0
    %846 = vmatpush2.bf16.msra.mxu0 0
    %847 = vmatprep.subr.bf16.mxu0 0
    %848 = vmatpush2.bf16.msra.mxu0 0
    %849 = vmatprep.mubr.bf16.mxu0 0
    %850 = vmatmul.mubr.bf16.gmra.mxu0 %v815
    %v851 = vpop.f32.mrf.mxu0
    %v852 = vadd.f32 0.0, %v851
    %v853 = vpop.f32.mrf.mxu0
    %v854 = vadd.f32 0.0, %v853
    %v855 = vpop.f32.mrf.mxu0
    %v856 = vpop.f32.mrf.mxu0
    %857 = vdwg.mxu0
    %v858 = vadd.f32 %v811, %v852
    %v859 = vadd.f32 %v812, %v854
    %v860 = vld [vmem:[#allocation4 + $0x20] sm:$0xff]
    %v861 = vld [vmem:[#allocation4 + $0x28] sm:$0xff]
    %v862 = vadd.f32 %v858, %v860
    %v863 = vadd.f32 %v859, %v861
    %v864 = vxor.u32 %v862, 2147483648
    %v865 = vxor.u32 %v863, 2147483648
    %v866 = vmul.f32 %v864, 1.442695
    %v867 = vpow.pop %v866
    %v868 = vmul.f32 %v865, 1.442695
    %v869 = vpow.pop %v868
    %v870 = vadd.f32 %v867, 1.0
    %v871 = vadd.f32 %v869, 1.0
    %v872 = vrcp.pop %v870
    %v873 = vmul.f32 1.0, %v872
    %v874 = vrcp.pop %v871
    %v875 = vmul.f32 1.0, %v874
    %v876 = vtanh.pop %v863
    %v877 = vmul.f32 %v873, %v803
    %879 = vrot.lane.b32.xlu0 %v876, 64
    %v880 = vpop.permute.xlu0 %879
    %v882 = vmul.f32 %v873, %v880
    %884 = vrot.lane.b32.xlu0 %v882, 64
    %v885 = vpop.permute.xlu0 %884
    %v887 = vadd.f32 %v877, %v885
    %v888 = vtanh.pop %v887
    %890 = vrot.lane.b32.xlu0 %v888, 64
    %v891 = vpop.permute.xlu0 %890
    %v893 = vmul.f32 %v875, %v891
    %894 = vst.msk [vmem:[#allocation2 + $0x28] sm:$0xff] %vm393, %v893
    %v895 = vld [vmem:[#allocation3 + $0x60] sm:$0xff]
    %v896 = vld [vmem:[#allocation3 + $0x68] sm:$0xff]
    %v897 = vpack.c.bf16 %v893, %v893
    %v899 = vsel %vm393, %v897, 0
    %901 = vmatprep.subr.bf16.mxu0 0
    %902 = vmatpush1.bf16.msra.mxu0 0
    %903 = vmatprep.subr.bf16.mxu0 0
    %904 = vmatpush1.bf16.msra.mxu0 0
    %905 = vmatprep.subr.bf16.mxu0 0
    %906 = vmatpush1.bf16.msra.mxu0 0
    %907 = vmatprep.subr.bf16.mxu0 0
    %908 = vmatpush1.bf16.msra.mxu0 0
    %909 = vmatprep.subr.bf16.mxu0 %v384
    %910 = vmatpush1.bf16.msra.mxu0 %v383
    %911 = vmatprep.subr.bf16.mxu0 %v382
    %912 = vmatpush1.bf16.msra.mxu0 %v381
    %913 = vmatprep.subr.bf16.mxu0 %v380
    %914 = vmatpush1.bf16.msra.mxu0 %v379
    %915 = vmatprep.subr.bf16.mxu0 %v378
    %916 = vmatpush1.bf16.msra.mxu0 %v377
    %917 = vmatprep.subr.bf16.mxu0 0
    %918 = vmatpush2.bf16.msra.mxu0 0
    %919 = vmatprep.subr.bf16.mxu0 0
    %920 = vmatpush2.bf16.msra.mxu0 0
    %921 = vmatprep.subr.bf16.mxu0 0
    %922 = vmatpush2.bf16.msra.mxu0 0
    %923 = vmatprep.subr.bf16.mxu0 0
    %924 = vmatpush2.bf16.msra.mxu0 0
    %925 = vmatprep.subr.bf16.mxu0 0
    %926 = vmatpush2.bf16.msra.mxu0 0
    %927 = vmatprep.subr.bf16.mxu0 0
    %928 = vmatpush2.bf16.msra.mxu0 0
    %929 = vmatprep.subr.bf16.mxu0 0
    %930 = vmatpush2.bf16.msra.mxu0 0
    %931 = vmatprep.subr.bf16.mxu0 0
    %932 = vmatpush2.bf16.msra.mxu0 0
    %933 = vmatprep.mubr.bf16.mxu0 0
    %934 = vmatmul.mubr.bf16.gmra.mxu0 %v899
    %v935 = vpop.f32.mrf.mxu0
    %v936 = vadd.f32 0.0, %v935
    %v937 = vpop.f32.mrf.mxu0
    %v938 = vadd.f32 0.0, %v937
    %v939 = vpop.f32.mrf.mxu0
    %v940 = vpop.f32.mrf.mxu0
    %941 = vdwg.mxu0
    %v942 = vadd.f32 %v895, %v936
    %v943 = vadd.f32 %v896, %v938
    %v944 = vld [vmem:[#allocation4 + $0x10] sm:$0xff]
    %v945 = vld [vmem:[#allocation4 + $0x18] sm:$0xff]
    %v946 = vadd.f32 %v942, %v944
    %v947 = vadd.f32 %v943, %v945
    %v948 = vxor.u32 %v946, 2147483648
    %v949 = vxor.u32 %v947, 2147483648
    %v950 = vmul.f32 %v948, 1.442695
    %v951 = vpow.pop %v950
    %v952 = vmul.f32 %v949, 1.442695
    %v953 = vpow.pop %v952
    %v954 = vadd.f32 %v951, 1.0
    %v955 = vadd.f32 %v953, 1.0
    %v956 = vrcp.pop %v954
    %v957 = vmul.f32 1.0, %v956
    %v958 = vrcp.pop %v955
    %v959 = vmul.f32 1.0, %v958
    %v960 = vtanh.pop %v947
    %v961 = vmul.f32 %v957, %v887
    %963 = vrot.lane.b32.xlu0 %v960, 64
    %v964 = vpop.permute.xlu0 %963
    %v966 = vmul.f32 %v957, %v964
    %968 = vrot.lane.b32.xlu0 %v966, 64
    %v969 = vpop.permute.xlu0 %968
    %v971 = vadd.f32 %v961, %v969
    %v972 = vtanh.pop %v971
    %974 = vrot.lane.b32.xlu0 %v972, 64
    %v975 = vpop.permute.xlu0 %974
    %v977 = vmul.f32 %v959, %v975
    %978 = vst.msk [vmem:[#allocation2 + $0x30] sm:$0xff] %vm393, %v977
    %v979 = vld [vmem:[#allocation3 + $0x70] sm:$0xff]
    %v980 = vld [vmem:[#allocation3 + $0x78] sm:$0xff]
    %v981 = vpack.c.bf16 %v977, %v977
    %v983 = vsel %vm393, %v981, 0
    %985 = vmatprep.subr.bf16.mxu0 0
    %986 = vmatpush1.bf16.msra.mxu0 0
    %987 = vmatprep.subr.bf16.mxu0 0
    %988 = vmatpush1.bf16.msra.mxu0 0
    %989 = vmatprep.subr.bf16.mxu0 0
    %990 = vmatpush1.bf16.msra.mxu0 0
    %991 = vmatprep.subr.bf16.mxu0 0
    %992 = vmatpush1.bf16.msra.mxu0 0
    %993 = vmatprep.subr.bf16.mxu0 %v384
    %994 = vmatpush1.bf16.msra.mxu0 %v383
    %995 = vmatprep.subr.bf16.mxu0 %v382
    %996 = vmatpush1.bf16.msra.mxu0 %v381
    %997 = vmatprep.subr.bf16.mxu0 %v380
    %998 = vmatpush1.bf16.msra.mxu0 %v379
    %999 = vmatprep.subr.bf16.mxu0 %v378
    %1000 = vmatpush1.bf16.msra.mxu0 %v377
    %1001 = vmatprep.subr.bf16.mxu0 0
    %1002 = vmatpush2.bf16.msra.mxu0 0
    %1003 = vmatprep.subr.bf16.mxu0 0
    %1004 = vmatpush2.bf16.msra.mxu0 0
    %1005 = vmatprep.subr.bf16.mxu0 0
    %1006 = vmatpush2.bf16.msra.mxu0 0
    %1007 = vmatprep.subr.bf16.mxu0 0
    %1008 = vmatpush2.bf16.msra.mxu0 0
    %1009 = vmatprep.subr.bf16.mxu0 0
    %1010 = vmatpush2.bf16.msra.mxu0 0
    %1011 = vmatprep.subr.bf16.mxu0 0
    %1012 = vmatpush2.bf16.msra.mxu0 0
    %1013 = vmatprep.subr.bf16.mxu0 0
    %1014 = vmatpush2.bf16.msra.mxu0 0
    %1015 = vmatprep.subr.bf16.mxu0 0
    %1016 = vmatpush2.bf16.msra.mxu0 0
    %1017 = vmatprep.mubr.bf16.mxu0 0
    %1018 = vmatmul.mubr.bf16.gmra.mxu0 %v983
    %v1019 = vpop.f32.mrf.mxu0
    %v1020 = vadd.f32 0.0, %v1019
    %v1021 = vpop.f32.mrf.mxu0
    %v1022 = vadd.f32 0.0, %v1021
    %v1023 = vpop.f32.mrf.mxu0
    %v1024 = vpop.f32.mrf.mxu0
    %1025 = vdwg.mxu0
    %v1026 = vadd.f32 %v979, %v1020
    %v1027 = vadd.f32 %v980, %v1022
    %v1028 = vld [vmem:[#allocation4] sm:$0xff]
    %v1029 = vld [vmem:[#allocation4 + $0x8] sm:$0xff]
    %v1030 = vadd.f32 %v1026, %v1028
    %v1031 = vadd.f32 %v1027, %v1029
    %v1032 = vxor.u32 %v1030, 2147483648
    %v1033 = vxor.u32 %v1031, 2147483648
    %v1034 = vmul.f32 %v1032, 1.442695
    %v1035 = vpow.pop %v1034
    %v1036 = vmul.f32 %v1033, 1.442695
    %v1037 = vpow.pop %v1036
    %v1038 = vadd.f32 %v1035, 1.0
    %v1039 = vadd.f32 %v1037, 1.0
    %v1040 = vrcp.pop %v1038
    %v1041 = vmul.f32 1.0, %v1040
    %v1042 = vrcp.pop %v1039
    %v1043 = vmul.f32 1.0, %v1042
    %v1044 = vtanh.pop %v1031
    %v1045 = vmul.f32 %v1041, %v971
    %1047 = vrot.lane.b32.xlu0 %v1044, 64
    %v1048 = vpop.permute.xlu0 %1047
    %v1050 = vmul.f32 %v1041, %v1048
    %1052 = vrot.lane.b32.xlu0 %v1050, 64
    %v1053 = vpop.permute.xlu0 %1052
    %v1055 = vadd.f32 %v1045, %v1053
    %v1056 = vtanh.pop %v1055
    %1058 = vrot.lane.b32.xlu0 %v1056, 64
    %v1059 = vpop.permute.xlu0 %1058
    %v1061 = vmul.f32 %v1043, %v1059
    %1062 = vst.msk [vmem:[#allocation2 + $0x38] sm:$0xff] %vm393, %v1061
    %v1063 = vld [vmem:[#allocation10] sm:$0xff]
    %v1064 = vld [vmem:[#allocation10 + $0x8] sm:$0xff]
    %v1065 = vld [vmem:[#allocation10 + $0x10] sm:$0xff]
    %v1066 = vld [vmem:[#allocation10 + $0x18] sm:$0xff]
    %v1067 = vld [vmem:[#allocation10 + $0x20] sm:$0xff]
    %v1068 = vld [vmem:[#allocation10 + $0x28] sm:$0xff]
    %v1069 = vld [vmem:[#allocation10 + $0x30] sm:$0xff]
    %v1070 = vld [vmem:[#allocation10 + $0x38] sm:$0xff]
    %v1071 = vld [vmem:[%s8] sm:$0x3]
    %v1072 = vld [vmem:[#allocation2] sm:$0xff]
    %v1073 = vld [vmem:[#allocation2 + $0x8] sm:$0xff]
    %v1074 = vld [vmem:[#allocation2 + $0x10] sm:$0xff]
    %v1075 = vld [vmem:[#allocation2 + $0x18] sm:$0xff]
    %v1076 = vld [vmem:[#allocation2 + $0x20] sm:$0xff]
    %v1077 = vld [vmem:[#allocation2 + $0x28] sm:$0xff]
    %v1078 = vld [vmem:[#allocation2 + $0x30] sm:$0xff]
    %v1079 = vld [vmem:[#allocation2 + $0x38] sm:$0xff]
    %v1080 = vpack.c.bf16 %v1073, %v1072
    %v1081 = vpack.c.bf16 %v1075, %v1074
    %v1082 = vpack.c.bf16 %v1077, %v1076
    %v1083 = vpack.c.bf16 %v1079, %v1078
    %v1084 = vld [vmem:[%s5] sm:$0xff]
    %v1085 = vld [vmem:[%s5 + $0x8] sm:$0xff]
    %v1086 = vld [vmem:[%s5 + $0x10] sm:$0xff]
    %v1087 = vld [vmem:[%s5 + $0x18] sm:$0xff]
    %v1088 = vld [vmem:[%s5 + $0x20] sm:$0xff]
    %v1089 = vld [vmem:[%s5 + $0x28] sm:$0xff]
    %v1090 = vld [vmem:[%s5 + $0x30] sm:$0xff]
    %v1091 = vld [vmem:[%s5 + $0x38] sm:$0xff]
    %v1093 = vlaneseq
    %v1094 = vshrl.u32 %v1093, 7
    %v1095 = vsub.s32 0, %v1094
    %v1096 = vrot.slane %v1071, %v1095
    %v1097 = vlaneseq
    %v1098 = vshrl.u32 %v1097, 7
    %v1099 = vsub.s32 1, %v1098
    %v1100 = vrot.slane %v1071, %v1099
    %v1111 = vunpack.c.l.b16 %v1084
    %v1112 = vunpack.c.h.b16 %v1084
    %v1113 = vunpack.c.l.b16 %v1085
    %v1114 = vunpack.c.h.b16 %v1085
    %v1115 = vunpack.c.l.b16 %v1086
    %v1116 = vunpack.c.h.b16 %v1086
    %v1117 = vunpack.c.l.b16 %v1087
    %v1118 = vunpack.c.h.b16 %v1087
    %v1119 = vunpack.c.l.b16 %v1088
    %v1120 = vunpack.c.h.b16 %v1088
    %v1121 = vunpack.c.l.b16 %v1089
    %v1122 = vunpack.c.h.b16 %v1089
    %v1123 = vunpack.c.l.b16 %v1090
    %v1124 = vunpack.c.h.b16 %v1090
    %v1125 = vunpack.c.l.b16 %v1091
    %v1126 = vunpack.c.h.b16 %v1091
    %v1127 = vpack.c.b16 %v1113, %v1111
    %v1128 = vpack.c.b16 %v1114, %v1112
    %v1129 = vpack.c.b16 %v1117, %v1115
    %v1130 = vpack.c.b16 %v1118, %v1116
    %v1131 = vpack.c.b16 %v1121, %v1119
    %v1132 = vpack.c.b16 %v1122, %v1120
    %v1133 = vpack.c.b16 %v1125, %v1123
    %v1134 = vpack.c.b16 %v1126, %v1124
    %v1144 = vsel %vm393, %v1080, 0
    %v1147 = vsel %vm393, %v1081, 0
    %v1150 = vsel %vm393, %v1082, 0
    %v1153 = vsel %vm393, %v1083, 0
    %1155 = vmatprep.subr.bf16.mxu0 0
    %1156 = vmatpush1.bf16.msra.mxu0 0
    %1157 = vmatprep.subr.bf16.mxu0 0
    %1158 = vmatpush1.bf16.msra.mxu0 0
    %1159 = vmatprep.subr.bf16.mxu0 0
    %1160 = vmatpush1.bf16.msra.mxu0 0
    %1161 = vmatprep.subr.bf16.mxu0 0
    %1162 = vmatpush1.bf16.msra.mxu0 0
    %1163 = vmatprep.subr.bf16.mxu0 %v1134
    %1164 = vmatpush1.bf16.msra.mxu0 %v1133
    %1165 = vmatprep.subr.bf16.mxu0 %v1132
    %1166 = vmatpush1.bf16.msra.mxu0 %v1131
    %1167 = vmatprep.subr.bf16.mxu0 %v1130
    %1168 = vmatpush1.bf16.msra.mxu0 %v1129
    %1169 = vmatprep.subr.bf16.mxu0 %v1128
    %1170 = vmatpush1.bf16.msra.mxu0 %v1127
    %1171 = vmatprep.subr.bf16.mxu0 0
    %1172 = vmatpush2.bf16.msra.mxu0 0
    %1173 = vmatprep.subr.bf16.mxu0 0
    %1174 = vmatpush2.bf16.msra.mxu0 0
    %1175 = vmatprep.subr.bf16.mxu0 0
    %1176 = vmatpush2.bf16.msra.mxu0 0
    %1177 = vmatprep.subr.bf16.mxu0 0
    %1178 = vmatpush2.bf16.msra.mxu0 0
    %1179 = vmatprep.subr.bf16.mxu0 0
    %1180 = vmatpush2.bf16.msra.mxu0 0
    %1181 = vmatprep.subr.bf16.mxu0 0
    %1182 = vmatpush2.bf16.msra.mxu0 0
    %1183 = vmatprep.subr.bf16.mxu0 0
    %1184 = vmatpush2.bf16.msra.mxu0 0
    %1185 = vmatprep.subr.bf16.mxu0 0
    %1186 = vmatpush2.bf16.msra.mxu0 0
    %1187 = vmatprep.mubr.bf16.mxu0 0
    %1188 = vmatmul.mubr.bf16.gmra.mxu0 %v1144
    %v1189 = vpop.f32.mrf.mxu0
    %v1190 = vadd.f32 %v1096, %v1189
    %v1191 = vpop.f32.mrf.mxu0
    %v1192 = vadd.f32 %v1100, %v1191
    %v1193 = vpop.f32.mrf.mxu0
    %v1194 = vadd.f32 %v1096, %v1193
    %v1195 = vpop.f32.mrf.mxu0
    %v1196 = vadd.f32 %v1100, %v1195
    %1197 = vmatprep.mubr.bf16.mxu0 0
    %1198 = vmatmul.mubr.bf16.gmra.mxu0 %v1147
    %v1199 = vpop.f32.mrf.mxu0
    %v1200 = vadd.f32 %v1096, %v1199
    %v1201 = vpop.f32.mrf.mxu0
    %v1202 = vadd.f32 %v1100, %v1201
    %v1203 = vpop.f32.mrf.mxu0
    %v1204 = vadd.f32 %v1096, %v1203
    %v1205 = vpop.f32.mrf.mxu0
    %v1206 = vadd.f32 %v1100, %v1205
    %1207 = vmatprep.mubr.bf16.mxu0 0
    %1208 = vmatmul.mubr.bf16.gmra.mxu0 %v1150
    %v1209 = vpop.f32.mrf.mxu0
    %v1210 = vadd.f32 %v1096, %v1209
    %v1211 = vpop.f32.mrf.mxu0
    %v1212 = vadd.f32 %v1100, %v1211
    %v1213 = vpop.f32.mrf.mxu0
    %v1214 = vadd.f32 %v1096, %v1213
    %v1215 = vpop.f32.mrf.mxu0
    %v1216 = vadd.f32 %v1100, %v1215
    %1217 = vmatprep.mubr.bf16.mxu0 0
    %1218 = vmatmul.mubr.bf16.gmra.mxu0 %v1153
    %v1219 = vpop.f32.mrf.mxu0
    %v1220 = vadd.f32 %v1096, %v1219
    %v1221 = vpop.f32.mrf.mxu0
    %v1222 = vadd.f32 %v1100, %v1221
    %v1223 = vpop.f32.mrf.mxu0
    %v1224 = vadd.f32 %v1096, %v1223
    %v1225 = vpop.f32.mrf.mxu0
    %v1226 = vadd.f32 %v1100, %v1225
    %1227 = vdwg.mxu0
    %1228 = vst [vmem:[#allocation3] sm:$0xff] %v1190
    %1229 = vst [vmem:[#allocation3 + $0x8] sm:$0xff] %v1192
    %1230 = vst [vmem:[#allocation3 + $0x10] sm:$0xff] %v1194
    %1231 = vst [vmem:[#allocation3 + $0x18] sm:$0xff] %v1196
    %1232 = vst [vmem:[#allocation3 + $0x20] sm:$0xff] %v1200
    %1233 = vst [vmem:[#allocation3 + $0x28] sm:$0xff] %v1202
    %1234 = vst [vmem:[#allocation3 + $0x30] sm:$0xff] %v1204
    %1235 = vst [vmem:[#allocation3 + $0x38] sm:$0xff] %v1206
    %1236 = vst [vmem:[#allocation3 + $0x40] sm:$0xff] %v1210
    %1237 = vst [vmem:[#allocation3 + $0x48] sm:$0xff] %v1212
    %1238 = vst [vmem:[#allocation3 + $0x50] sm:$0xff] %v1214
    %1239 = vst [vmem:[#allocation3 + $0x58] sm:$0xff] %v1216
    %1240 = vst [vmem:[#allocation3 + $0x60] sm:$0xff] %v1220
    %1241 = vst [vmem:[#allocation3 + $0x68] sm:$0xff] %v1222
    %1242 = vst [vmem:[#allocation3 + $0x70] sm:$0xff] %v1224
    %1243 = vst [vmem:[#allocation3 + $0x78] sm:$0xff] %v1226
    %v1244 = vld [vmem:[#allocation9] sm:$0xff]
    %v1245 = vld [vmem:[#allocation9 + $0x8] sm:$0xff]
    %v1246 = vld [vmem:[#allocation9 + $0x10] sm:$0xff]
    %v1247 = vld [vmem:[#allocation9 + $0x18] sm:$0xff]
    %v1248 = vld [vmem:[#allocation9 + $0x20] sm:$0xff]
    %v1249 = vld [vmem:[#allocation9 + $0x28] sm:$0xff]
    %v1250 = vld [vmem:[#allocation9 + $0x30] sm:$0xff]
    %v1251 = vld [vmem:[#allocation9 + $0x38] sm:$0xff]
    %v1260 = vunpack.c.l.b16 %v1244
    %v1261 = vunpack.c.h.b16 %v1244
    %v1262 = vunpack.c.l.b16 %v1245
    %v1263 = vunpack.c.h.b16 %v1245
    %v1264 = vunpack.c.l.b16 %v1246
    %v1265 = vunpack.c.h.b16 %v1246
    %v1266 = vunpack.c.l.b16 %v1247
    %v1267 = vunpack.c.h.b16 %v1247
    %v1268 = vunpack.c.l.b16 %v1248
    %v1269 = vunpack.c.h.b16 %v1248
    %v1270 = vunpack.c.l.b16 %v1249
    %v1271 = vunpack.c.h.b16 %v1249
    %v1272 = vunpack.c.l.b16 %v1250
    %v1273 = vunpack.c.h.b16 %v1250
    %v1274 = vunpack.c.l.b16 %v1251
    %v1275 = vunpack.c.h.b16 %v1251
    %v1276 = vpack.c.b16 %v1262, %v1260
    %v1277 = vpack.c.b16 %v1263, %v1261
    %v1278 = vpack.c.b16 %v1266, %v1264
    %v1279 = vpack.c.b16 %v1267, %v1265
    %v1280 = vpack.c.b16 %v1270, %v1268
    %v1281 = vpack.c.b16 %v1271, %v1269
    %v1282 = vpack.c.b16 %v1274, %v1272
    %v1283 = vpack.c.b16 %v1275, %v1273
    %1292 = vmatprep.subr.bf16.mxu0 0
    %1293 = vmatpush1.bf16.msra.mxu0 0
    %1294 = vmatprep.subr.bf16.mxu0 0
    %1295 = vmatpush1.bf16.msra.mxu0 0
    %1296 = vmatprep.subr.bf16.mxu0 0
    %1297 = vmatpush1.bf16.msra.mxu0 0
    %1298 = vmatprep.subr.bf16.mxu0 0
    %1299 = vmatpush1.bf16.msra.mxu0 0
    %1300 = vmatprep.subr.bf16.mxu0 %v1283
    %1301 = vmatpush1.bf16.msra.mxu0 %v1282
    %1302 = vmatprep.subr.bf16.mxu0 %v1281
    %1303 = vmatpush1.bf16.msra.mxu0 %v1280
    %1304 = vmatprep.subr.bf16.mxu0 %v1279
    %1305 = vmatpush1.bf16.msra.mxu0 %v1278
    %1306 = vmatprep.subr.bf16.mxu0 %v1277
    %1307 = vmatpush1.bf16.msra.mxu0 %v1276
    %1308 = vmatprep.subr.bf16.mxu0 0
    %1309 = vmatpush2.bf16.msra.mxu0 0
    %1310 = vmatprep.subr.bf16.mxu0 0
    %1311 = vmatpush2.bf16.msra.mxu0 0
    %1312 = vmatprep.subr.bf16.mxu0 0
    %1313 = vmatpush2.bf16.msra.mxu0 0
    %1314 = vmatprep.subr.bf16.mxu0 0
    %1315 = vmatpush2.bf16.msra.mxu0 0
    %1316 = vmatprep.subr.bf16.mxu0 0
    %1317 = vmatpush2.bf16.msra.mxu0 0
    %1318 = vmatprep.subr.bf16.mxu0 0
    %1319 = vmatpush2.bf16.msra.mxu0 0
    %1320 = vmatprep.subr.bf16.mxu0 0
    %1321 = vmatpush2.bf16.msra.mxu0 0
    %1322 = vmatprep.subr.bf16.mxu0 0
    %1323 = vmatpush2.bf16.msra.mxu0 0
    %1324 = vmatprep.mubr.bf16.mxu0 0
    %1325 = vmatmul.mubr.bf16.gmra.mxu0 %v1144
    %v1326 = vpop.f32.mrf.mxu0
    %v1327 = vadd.f32 0.0, %v1326
    %v1328 = vpop.f32.mrf.mxu0
    %v1329 = vadd.f32 0.0, %v1328
    %v1330 = vpop.f32.mrf.mxu0
    %v1331 = vadd.f32 0.0, %v1330
    %v1332 = vpop.f32.mrf.mxu0
    %v1333 = vadd.f32 0.0, %v1332
    %1334 = vmatprep.mubr.bf16.mxu0 0
    %1335 = vmatmul.mubr.bf16.gmra.mxu0 %v1147
    %v1336 = vpop.f32.mrf.mxu0
    %v1337 = vadd.f32 0.0, %v1336
    %v1338 = vpop.f32.mrf.mxu0
    %v1339 = vadd.f32 0.0, %v1338
    %v1340 = vpop.f32.mrf.mxu0
    %v1341 = vadd.f32 0.0, %v1340
    %v1342 = vpop.f32.mrf.mxu0
    %v1343 = vadd.f32 0.0, %v1342
    %1344 = vmatprep.mubr.bf16.mxu0 0
    %1345 = vmatmul.mubr.bf16.gmra.mxu0 %v1150
    %v1346 = vpop.f32.mrf.mxu0
    %v1347 = vadd.f32 0.0, %v1346
    %v1348 = vpop.f32.mrf.mxu0
    %v1349 = vadd.f32 0.0, %v1348
    %v1350 = vpop.f32.mrf.mxu0
    %v1351 = vadd.f32 0.0, %v1350
    %v1352 = vpop.f32.mrf.mxu0
    %v1353 = vadd.f32 0.0, %v1352
    %1354 = vmatprep.mubr.bf16.mxu0 0
    %1355 = vmatmul.mubr.bf16.gmra.mxu0 %v1153
    %v1356 = vpop.f32.mrf.mxu0
    %v1357 = vadd.f32 0.0, %v1356
    %v1358 = vpop.f32.mrf.mxu0
    %v1359 = vadd.f32 0.0, %v1358
    %v1360 = vpop.f32.mrf.mxu0
    %v1361 = vadd.f32 0.0, %v1360
    %v1362 = vpop.f32.mrf.mxu0
    %v1363 = vadd.f32 0.0, %v1362
    %1364 = vdwg.mxu0
    %1365 = vst [vmem:[#allocation4] sm:$0xff] %v1327
    %1366 = vst [vmem:[#allocation4 + $0x8] sm:$0xff] %v1329
    %1367 = vst [vmem:[#allocation4 + $0x10] sm:$0xff] %v1331
    %1368 = vst [vmem:[#allocation4 + $0x18] sm:$0xff] %v1333
    %1369 = vst [vmem:[#allocation4 + $0x20] sm:$0xff] %v1337
    %1370 = vst [vmem:[#allocation4 + $0x28] sm:$0xff] %v1339
    %1371 = vst [vmem:[#allocation4 + $0x30] sm:$0xff] %v1341
    %1372 = vst [vmem:[#allocation4 + $0x38] sm:$0xff] %v1343
    %1373 = vst [vmem:[#allocation4 + $0x40] sm:$0xff] %v1347
    %1374 = vst [vmem:[#allocation4 + $0x48] sm:$0xff] %v1349
    %1375 = vst [vmem:[#allocation4 + $0x50] sm:$0xff] %v1351
    %1376 = vst [vmem:[#allocation4 + $0x58] sm:$0xff] %v1353
    %1377 = vst [vmem:[#allocation4 + $0x60] sm:$0xff] %v1357
    %1378 = vst [vmem:[#allocation4 + $0x68] sm:$0xff] %v1359
    %1379 = vst [vmem:[#allocation4 + $0x70] sm:$0xff] %v1361
    %1380 = vst [vmem:[#allocation4 + $0x78] sm:$0xff] %v1363
    %v1381 = vld [vmem:[#allocation3] sm:$0xff]
    %v1382 = vld [vmem:[#allocation3 + $0x8] sm:$0xff]
    %v1391 = vunpack.c.l.b16 %v1063
    %v1392 = vunpack.c.h.b16 %v1063
    %v1393 = vunpack.c.l.b16 %v1064
    %v1394 = vunpack.c.h.b16 %v1064
    %v1395 = vunpack.c.l.b16 %v1065
    %v1396 = vunpack.c.h.b16 %v1065
    %v1397 = vunpack.c.l.b16 %v1066
    %v1398 = vunpack.c.h.b16 %v1066
    %v1399 = vunpack.c.l.b16 %v1067
    %v1400 = vunpack.c.h.b16 %v1067
    %v1401 = vunpack.c.l.b16 %v1068
    %v1402 = vunpack.c.h.b16 %v1068
    %v1403 = vunpack.c.l.b16 %v1069
    %v1404 = vunpack.c.h.b16 %v1069
    %v1405 = vunpack.c.l.b16 %v1070
    %v1406 = vunpack.c.h.b16 %v1070
    %v1407 = vpack.c.b16 %v1393, %v1391
    %v1408 = vpack.c.b16 %v1394, %v1392
    %v1409 = vpack.c.b16 %v1397, %v1395
    %v1410 = vpack.c.b16 %v1398, %v1396
    %v1411 = vpack.c.b16 %v1401, %v1399
    %v1412 = vpack.c.b16 %v1402, %v1400
    %v1413 = vpack.c.b16 %v1405, %v1403
    %v1414 = vpack.c.b16 %v1406, %v1404
    %1423 = vmatprep.subr.bf16.mxu0 0
    %1424 = vmatpush1.bf16.msra.mxu0 0
    %1425 = vmatprep.subr.bf16.mxu0 0
    %1426 = vmatpush1.bf16.msra.mxu0 0
    %1427 = vmatprep.subr.bf16.mxu0 0
    %1428 = vmatpush1.bf16.msra.mxu0 0
    %1429 = vmatprep.subr.bf16.mxu0 0
    %1430 = vmatpush1.bf16.msra.mxu0 0
    %1431 = vmatprep.subr.bf16.mxu0 %v1414
    %1432 = vmatpush1.bf16.msra.mxu0 %v1413
    %1433 = vmatprep.subr.bf16.mxu0 %v1412
    %1434 = vmatpush1.bf16.msra.mxu0 %v1411
    %1435 = vmatprep.subr.bf16.mxu0 %v1410
    %1436 = vmatpush1.bf16.msra.mxu0 %v1409
    %1437 = vmatprep.subr.bf16.mxu0 %v1408
    %1438 = vmatpush1.bf16.msra.mxu0 %v1407
    %1439 = vmatprep.subr.bf16.mxu0 0
    %1440 = vmatpush2.bf16.msra.mxu0 0
    %1441 = vmatprep.subr.bf16.mxu0 0
    %1442 = vmatpush2.bf16.msra.mxu0 0
    %1443 = vmatprep.subr.bf16.mxu0 0
    %1444 = vmatpush2.bf16.msra.mxu0 0
    %1445 = vmatprep.subr.bf16.mxu0 0
    %1446 = vmatpush2.bf16.msra.mxu0 0
    %1447 = vmatprep.subr.bf16.mxu0 0
    %1448 = vmatpush2.bf16.msra.mxu0 0
    %1449 = vmatprep.subr.bf16.mxu0 0
    %1450 = vmatpush2.bf16.msra.mxu0 0
    %1451 = vmatprep.subr.bf16.mxu0 0
    %1452 = vmatpush2.bf16.msra.mxu0 0
    %1453 = vmatprep.subr.bf16.mxu0 0
    %1454 = vmatpush2.bf16.msra.mxu0 0
    %1455 = vmatprep.mubr.bf16.mxu0 0
    %1456 = vmatmul.mubr.bf16.gmra.mxu0 %v395
    %v1457 = vpop.f32.mrf.mxu0
    %v1458 = vadd.f32 0.0, %v1457
    %v1459 = vpop.f32.mrf.mxu0
    %v1460 = vadd.f32 0.0, %v1459
    %v1461 = vpop.f32.mrf.mxu0
    %v1462 = vpop.f32.mrf.mxu0
    %1463 = vdwg.mxu0
    %v1464 = vadd.f32 %v1381, %v1458
    %v1465 = vadd.f32 %v1382, %v1460
    %v1466 = vld [vmem:[#allocation4 + $0x70] sm:$0xff]
    %v1467 = vld [vmem:[#allocation4 + $0x78] sm:$0xff]
    %v1468 = vadd.f32 %v1464, %v1466
    %v1469 = vadd.f32 %v1465, %v1467
    %v1470 = vxor.u32 %v1468, 2147483648
    %v1471 = vxor.u32 %v1469, 2147483648
    %v1472 = vmul.f32 %v1470, 1.442695
    %v1473 = vpow.pop %v1472
    %v1474 = vmul.f32 %v1471, 1.442695
    %v1475 = vpow.pop %v1474
    %v1476 = vadd.f32 %v1473, 1.0
    %v1477 = vadd.f32 %v1475, 1.0
    %v1478 = vrcp.pop %v1476
    %v1479 = vmul.f32 1.0, %v1478
    %v1480 = vrcp.pop %v1477
    %v1481 = vmul.f32 1.0, %v1480
    %v1482 = vtanh.pop %v1469
    %v1483 = vmul.f32 %v1479, 0.0
    %1485 = vrot.lane.b32.xlu0 %v1482, 64
    %v1486 = vpop.permute.xlu0 %1485
    %v1488 = vmul.f32 %v1479, %v1486
    %1490 = vrot.lane.b32.xlu0 %v1488, 64
    %v1491 = vpop.permute.xlu0 %1490
    %v1493 = vadd.f32 %v1483, %v1491
    %v1494 = vtanh.pop %v1493
    %1496 = vrot.lane.b32.xlu0 %v1494, 64
    %v1497 = vpop.permute.xlu0 %1496
    %v1499 = vmul.f32 %v1481, %v1497
    %v1500 = vld [vmem:[#allocation3 + $0x10] sm:$0xff]
    %v1501 = vld [vmem:[#allocation3 + $0x18] sm:$0xff]
    %v1502 = vpack.c.bf16 %v1499, %v1499
    %v1504 = vsel %vm393, %v1502, 0
    %1506 = vmatprep.subr.bf16.mxu0 0
    %1507 = vmatpush1.bf16.msra.mxu0 0
    %1508 = vmatprep.subr.bf16.mxu0 0
    %1509 = vmatpush1.bf16.msra.mxu0 0
    %1510 = vmatprep.subr.bf16.mxu0 0
    %1511 = vmatpush1.bf16.msra.mxu0 0
    %1512 = vmatprep.subr.bf16.mxu0 0
    %1513 = vmatpush1.bf16.msra.mxu0 0
    %1514 = vmatprep.subr.bf16.mxu0 %v1414
    %1515 = vmatpush1.bf16.msra.mxu0 %v1413
    %1516 = vmatprep.subr.bf16.mxu0 %v1412
    %1517 = vmatpush1.bf16.msra.mxu0 %v1411
    %1518 = vmatprep.subr.bf16.mxu0 %v1410
    %1519 = vmatpush1.bf16.msra.mxu0 %v1409
    %1520 = vmatprep.subr.bf16.mxu0 %v1408
    %1521 = vmatpush1.bf16.msra.mxu0 %v1407
    %1522 = vmatprep.subr.bf16.mxu0 0
    %1523 = vmatpush2.bf16.msra.mxu0 0
    %1524 = vmatprep.subr.bf16.mxu0 0
    %1525 = vmatpush2.bf16.msra.mxu0 0
    %1526 = vmatprep.subr.bf16.mxu0 0
    %1527 = vmatpush2.bf16.msra.mxu0 0
    %1528 = vmatprep.subr.bf16.mxu0 0
    %1529 = vmatpush2.bf16.msra.mxu0 0
    %1530 = vmatprep.subr.bf16.mxu0 0
    %1531 = vmatpush2.bf16.msra.mxu0 0
    %1532 = vmatprep.subr.bf16.mxu0 0
    %1533 = vmatpush2.bf16.msra.mxu0 0
    %1534 = vmatprep.subr.bf16.mxu0 0
    %1535 = vmatpush2.bf16.msra.mxu0 0
    %1536 = vmatprep.subr.bf16.mxu0 0
    %1537 = vmatpush2.bf16.msra.mxu0 0
    %1538 = vmatprep.mubr.bf16.mxu0 0
    %1539 = vmatmul.mubr.bf16.gmra.mxu0 %v1504
    %v1540 = vpop.f32.mrf.mxu0
    %v1541 = vadd.f32 0.0, %v1540
    %v1542 = vpop.f32.mrf.mxu0
    %v1543 = vadd.f32 0.0, %v1542
    %v1544 = vpop.f32.mrf.mxu0
    %v1545 = vpop.f32.mrf.mxu0
    %1546 = vdwg.mxu0
    %v1547 = vadd.f32 %v1500, %v1541
    %v1548 = vadd.f32 %v1501, %v1543
    %v1549 = vld [vmem:[#allocation4 + $0x60] sm:$0xff]
    %v1550 = vld [vmem:[#allocation4 + $0x68] sm:$0xff]
    %v1551 = vadd.f32 %v1547, %v1549
    %v1552 = vadd.f32 %v1548, %v1550
    %v1553 = vxor.u32 %v1551, 2147483648
    %v1554 = vxor.u32 %v1552, 2147483648
    %v1555 = vmul.f32 %v1553, 1.442695
    %v1556 = vpow.pop %v1555
    %v1557 = vmul.f32 %v1554, 1.442695
    %v1558 = vpow.pop %v1557
    %v1559 = vadd.f32 %v1556, 1.0
    %v1560 = vadd.f32 %v1558, 1.0
    %v1561 = vrcp.pop %v1559
    %v1562 = vmul.f32 1.0, %v1561
    %v1563 = vrcp.pop %v1560
    %v1564 = vmul.f32 1.0, %v1563
    %v1565 = vtanh.pop %v1552
    %v1566 = vmul.f32 %v1562, %v1493
    %1568 = vrot.lane.b32.xlu0 %v1565, 64
    %v1569 = vpop.permute.xlu0 %1568
    %v1571 = vmul.f32 %v1562, %v1569
    %1573 = vrot.lane.b32.xlu0 %v1571, 64
    %v1574 = vpop.permute.xlu0 %1573
    %v1576 = vadd.f32 %v1566, %v1574
    %v1577 = vtanh.pop %v1576
    %1579 = vrot.lane.b32.xlu0 %v1577, 64
    %v1580 = vpop.permute.xlu0 %1579
    %v1582 = vmul.f32 %v1564, %v1580
    %v1583 = vld [vmem:[#allocation3 + $0x20] sm:$0xff]
    %v1584 = vld [vmem:[#allocation3 + $0x28] sm:$0xff]
    %v1585 = vpack.c.bf16 %v1582, %v1582
    %v1587 = vsel %vm393, %v1585, 0
    %1589 = vmatprep.subr.bf16.mxu0 0
    %1590 = vmatpush1.bf16.msra.mxu0 0
    %1591 = vmatprep.subr.bf16.mxu0 0
    %1592 = vmatpush1.bf16.msra.mxu0 0
    %1593 = vmatprep.subr.bf16.mxu0 0
    %1594 = vmatpush1.bf16.msra.mxu0 0
    %1595 = vmatprep.subr.bf16.mxu0 0
    %1596 = vmatpush1.bf16.msra.mxu0 0
    %1597 = vmatprep.subr.bf16.mxu0 %v1414
    %1598 = vmatpush1.bf16.msra.mxu0 %v1413
    %1599 = vmatprep.subr.bf16.mxu0 %v1412
    %1600 = vmatpush1.bf16.msra.mxu0 %v1411
    %1601 = vmatprep.subr.bf16.mxu0 %v1410
    %1602 = vmatpush1.bf16.msra.mxu0 %v1409
    %1603 = vmatprep.subr.bf16.mxu0 %v1408
    %1604 = vmatpush1.bf16.msra.mxu0 %v1407
    %1605 = vmatprep.subr.bf16.mxu0 0
    %1606 = vmatpush2.bf16.msra.mxu0 0
    %1607 = vmatprep.subr.bf16.mxu0 0
    %1608 = vmatpush2.bf16.msra.mxu0 0
    %1609 = vmatprep.subr.bf16.mxu0 0
    %1610 = vmatpush2.bf16.msra.mxu0 0
    %1611 = vmatprep.subr.bf16.mxu0 0
    %1612 = vmatpush2.bf16.msra.mxu0 0
    %1613 = vmatprep.subr.bf16.mxu0 0
    %1614 = vmatpush2.bf16.msra.mxu0 0
    %1615 = vmatprep.subr.bf16.mxu0 0
    %1616 = vmatpush2.bf16.msra.mxu0 0
    %1617 = vmatprep.subr.bf16.mxu0 0
    %1618 = vmatpush2.bf16.msra.mxu0 0
    %1619 = vmatprep.subr.bf16.mxu0 0
    %1620 = vmatpush2.bf16.msra.mxu0 0
    %1621 = vmatprep.mubr.bf16.mxu0 0
    %1622 = vmatmul.mubr.bf16.gmra.mxu0 %v1587
    %v1623 = vpop.f32.mrf.mxu0
    %v1624 = vadd.f32 0.0, %v1623
    %v1625 = vpop.f32.mrf.mxu0
    %v1626 = vadd.f32 0.0, %v1625
    %v1627 = vpop.f32.mrf.mxu0
    %v1628 = vpop.f32.mrf.mxu0
    %1629 = vdwg.mxu0
    %v1630 = vadd.f32 %v1583, %v1624
    %v1631 = vadd.f32 %v1584, %v1626
    %v1632 = vld [vmem:[#allocation4 + $0x50] sm:$0xff]
    %v1633 = vld [vmem:[#allocation4 + $0x58] sm:$0xff]
    %v1634 = vadd.f32 %v1630, %v1632
    %v1635 = vadd.f32 %v1631, %v1633
    %v1636 = vxor.u32 %v1634, 2147483648
    %v1637 = vxor.u32 %v1635, 2147483648
    %v1638 = vmul.f32 %v1636, 1.442695
    %v1639 = vpow.pop %v1638
    %v1640 = vmul.f32 %v1637, 1.442695
    %v1641 = vpow.pop %v1640
    %v1642 = vadd.f32 %v1639, 1.0
    %v1643 = vadd.f32 %v1641, 1.0
    %v1644 = vrcp.pop %v1642
    %v1645 = vmul.f32 1.0, %v1644
    %v1646 = vrcp.pop %v1643
    %v1647 = vmul.f32 1.0, %v1646
    %v1648 = vtanh.pop %v1635
    %v1649 = vmul.f32 %v1645, %v1576
    %1651 = vrot.lane.b32.xlu0 %v1648, 64
    %v1652 = vpop.permute.xlu0 %1651
    %v1654 = vmul.f32 %v1645, %v1652
    %1656 = vrot.lane.b32.xlu0 %v1654, 64
    %v1657 = vpop.permute.xlu0 %1656
    %v1659 = vadd.f32 %v1649, %v1657
    %v1660 = vtanh.pop %v1659
    %1662 = vrot.lane.b32.xlu0 %v1660, 64
    %v1663 = vpop.permute.xlu0 %1662
    %v1665 = vmul.f32 %v1647, %v1663
    %v1666 = vld [vmem:[#allocation3 + $0x30] sm:$0xff]
    %v1667 = vld [vmem:[#allocation3 + $0x38] sm:$0xff]
    %v1668 = vpack.c.bf16 %v1665, %v1665
    %v1670 = vsel %vm393, %v1668, 0
    %1672 = vmatprep.subr.bf16.mxu0 0
    %1673 = vmatpush1.bf16.msra.mxu0 0
    %1674 = vmatprep.subr.bf16.mxu0 0
    %1675 = vmatpush1.bf16.msra.mxu0 0
    %1676 = vmatprep.subr.bf16.mxu0 0
    %1677 = vmatpush1.bf16.msra.mxu0 0
    %1678 = vmatprep.subr.bf16.mxu0 0
    %1679 = vmatpush1.bf16.msra.mxu0 0
    %1680 = vmatprep.subr.bf16.mxu0 %v1414
    %1681 = vmatpush1.bf16.msra.mxu0 %v1413
    %1682 = vmatprep.subr.bf16.mxu0 %v1412
    %1683 = vmatpush1.bf16.msra.mxu0 %v1411
    %1684 = vmatprep.subr.bf16.mxu0 %v1410
    %1685 = vmatpush1.bf16.msra.mxu0 %v1409
    %1686 = vmatprep.subr.bf16.mxu0 %v1408
    %1687 = vmatpush1.bf16.msra.mxu0 %v1407
    %1688 = vmatprep.subr.bf16.mxu0 0
    %1689 = vmatpush2.bf16.msra.mxu0 0
    %1690 = vmatprep.subr.bf16.mxu0 0
    %1691 = vmatpush2.bf16.msra.mxu0 0
    %1692 = vmatprep.subr.bf16.mxu0 0
    %1693 = vmatpush2.bf16.msra.mxu0 0
    %1694 = vmatprep.subr.bf16.mxu0 0
    %1695 = vmatpush2.bf16.msra.mxu0 0
    %1696 = vmatprep.subr.bf16.mxu0 0
    %1697 = vmatpush2.bf16.msra.mxu0 0
    %1698 = vmatprep.subr.bf16.mxu0 0
    %1699 = vmatpush2.bf16.msra.mxu0 0
    %1700 = vmatprep.subr.bf16.mxu0 0
    %1701 = vmatpush2.bf16.msra.mxu0 0
    %1702 = vmatprep.subr.bf16.mxu0 0
    %1703 = vmatpush2.bf16.msra.mxu0 0
    %1704 = vmatprep.mubr.bf16.mxu0 0
    %1705 = vmatmul.mubr.bf16.gmra.mxu0 %v1670
    %v1706 = vpop.f32.mrf.mxu0
    %v1707 = vadd.f32 0.0, %v1706
    %v1708 = vpop.f32.mrf.mxu0
    %v1709 = vadd.f32 0.0, %v1708
    %v1710 = vpop.f32.mrf.mxu0
    %v1711 = vpop.f32.mrf.mxu0
    %1712 = vdwg.mxu0
    %v1713 = vadd.f32 %v1666, %v1707
    %v1714 = vadd.f32 %v1667, %v1709
    %v1715 = vld [vmem:[#allocation4 + $0x40] sm:$0xff]
    %v1716 = vld [vmem:[#allocation4 + $0x48] sm:$0xff]
    %v1717 = vadd.f32 %v1713, %v1715
    %v1718 = vadd.f32 %v1714, %v1716
    %v1719 = vxor.u32 %v1717, 2147483648
    %v1720 = vxor.u32 %v1718, 2147483648
    %v1721 = vmul.f32 %v1719, 1.442695
    %v1722 = vpow.pop %v1721
    %v1723 = vmul.f32 %v1720, 1.442695
    %v1724 = vpow.pop %v1723
    %v1725 = vadd.f32 %v1722, 1.0
    %v1726 = vadd.f32 %v1724, 1.0
    %v1727 = vrcp.pop %v1725
    %v1728 = vmul.f32 1.0, %v1727
    %v1729 = vrcp.pop %v1726
    %v1730 = vmul.f32 1.0, %v1729
    %v1731 = vtanh.pop %v1718
    %v1732 = vmul.f32 %v1728, %v1659
    %1734 = vrot.lane.b32.xlu0 %v1731, 64
    %v1735 = vpop.permute.xlu0 %1734
    %v1737 = vmul.f32 %v1728, %v1735
    %1739 = vrot.lane.b32.xlu0 %v1737, 64
    %v1740 = vpop.permute.xlu0 %1739
    %v1742 = vadd.f32 %v1732, %v1740
    %v1743 = vtanh.pop %v1742
    %1745 = vrot.lane.b32.xlu0 %v1743, 64
    %v1746 = vpop.permute.xlu0 %1745
    %v1748 = vmul.f32 %v1730, %v1746
    %v1749 = vld [vmem:[#allocation3 + $0x40] sm:$0xff]
    %v1750 = vld [vmem:[#allocation3 + $0x48] sm:$0xff]
    %v1751 = vpack.c.bf16 %v1748, %v1748
    %v1753 = vsel %vm393, %v1751, 0
    %1755 = vmatprep.subr.bf16.mxu0 0
    %1756 = vmatpush1.bf16.msra.mxu0 0
    %1757 = vmatprep.subr.bf16.mxu0 0
    %1758 = vmatpush1.bf16.msra.mxu0 0
    %1759 = vmatprep.subr.bf16.mxu0 0
    %1760 = vmatpush1.bf16.msra.mxu0 0
    %1761 = vmatprep.subr.bf16.mxu0 0
    %1762 = vmatpush1.bf16.msra.mxu0 0
    %1763 = vmatprep.subr.bf16.mxu0 %v1414
    %1764 = vmatpush1.bf16.msra.mxu0 %v1413
    %1765 = vmatprep.subr.bf16.mxu0 %v1412
    %1766 = vmatpush1.bf16.msra.mxu0 %v1411
    %1767 = vmatprep.subr.bf16.mxu0 %v1410
    %1768 = vmatpush1.bf16.msra.mxu0 %v1409
    %1769 = vmatprep.subr.bf16.mxu0 %v1408
    %1770 = vmatpush1.bf16.msra.mxu0 %v1407
    %1771 = vmatprep.subr.bf16.mxu0 0
    %1772 = vmatpush2.bf16.msra.mxu0 0
    %1773 = vmatprep.subr.bf16.mxu0 0
    %1774 = vmatpush2.bf16.msra.mxu0 0
    %1775 = vmatprep.subr.bf16.mxu0 0
    %1776 = vmatpush2.bf16.msra.mxu0 0
    %1777 = vmatprep.subr.bf16.mxu0 0
    %1778 = vmatpush2.bf16.msra.mxu0 0
    %1779 = vmatprep.subr.bf16.mxu0 0
    %1780 = vmatpush2.bf16.msra.mxu0 0
    %1781 = vmatprep.subr.bf16.mxu0 0
    %1782 = vmatpush2.bf16.msra.mxu0 0
    %1783 = vmatprep.subr.bf16.mxu0 0
    %1784 = vmatpush2.bf16.msra.mxu0 0
    %1785 = vmatprep.subr.bf16.mxu0 0
    %1786 = vmatpush2.bf16.msra.mxu0 0
    %1787 = vmatprep.mubr.bf16.mxu0 0
    %1788 = vmatmul.mubr.bf16.gmra.mxu0 %v1753
    %v1789 = vpop.f32.mrf.mxu0
    %v1790 = vadd.f32 0.0, %v1789
    %v1791 = vpop.f32.mrf.mxu0
    %v1792 = vadd.f32 0.0, %v1791
    %v1793 = vpop.f32.mrf.mxu0
    %v1794 = vpop.f32.mrf.mxu0
    %1795 = vdwg.mxu0
    %v1796 = vadd.f32 %v1749, %v1790
    %v1797 = vadd.f32 %v1750, %v1792
    %v1798 = vld [vmem:[#allocation4 + $0x30] sm:$0xff]
    %v1799 = vld [vmem:[#allocation4 + $0x38] sm:$0xff]
    %v1800 = vadd.f32 %v1796, %v1798
    %v1801 = vadd.f32 %v1797, %v1799
    %v1802 = vxor.u32 %v1800, 2147483648
    %v1803 = vxor.u32 %v1801, 2147483648
    %v1804 = vmul.f32 %v1802, 1.442695
    %v1805 = vpow.pop %v1804
    %v1806 = vmul.f32 %v1803, 1.442695
    %v1807 = vpow.pop %v1806
    %v1808 = vadd.f32 %v1805, 1.0
    %v1809 = vadd.f32 %v1807, 1.0
    %v1810 = vrcp.pop %v1808
    %v1811 = vmul.f32 1.0, %v1810
    %v1812 = vrcp.pop %v1809
    %v1813 = vmul.f32 1.0, %v1812
    %v1814 = vtanh.pop %v1801
    %v1815 = vmul.f32 %v1811, %v1742
    %1817 = vrot.lane.b32.xlu0 %v1814, 64
    %v1818 = vpop.permute.xlu0 %1817
    %v1820 = vmul.f32 %v1811, %v1818
    %1822 = vrot.lane.b32.xlu0 %v1820, 64
    %v1823 = vpop.permute.xlu0 %1822
    %v1825 = vadd.f32 %v1815, %v1823
    %v1826 = vtanh.pop %v1825
    %1828 = vrot.lane.b32.xlu0 %v1826, 64
    %v1829 = vpop.permute.xlu0 %1828
    %v1831 = vmul.f32 %v1813, %v1829
    %v1832 = vld [vmem:[#allocation3 + $0x50] sm:$0xff]
    %v1833 = vld [vmem:[#allocation3 + $0x58] sm:$0xff]
    %v1834 = vpack.c.bf16 %v1831, %v1831
    %v1836 = vsel %vm393, %v1834, 0
    %1838 = vmatprep.subr.bf16.mxu0 0
    %1839 = vmatpush1.bf16.msra.mxu0 0
    %1840 = vmatprep.subr.bf16.mxu0 0
    %1841 = vmatpush1.bf16.msra.mxu0 0
    %1842 = vmatprep.subr.bf16.mxu0 0
    %1843 = vmatpush1.bf16.msra.mxu0 0
    %1844 = vmatprep.subr.bf16.mxu0 0
    %1845 = vmatpush1.bf16.msra.mxu0 0
    %1846 = vmatprep.subr.bf16.mxu0 %v1414
    %1847 = vmatpush1.bf16.msra.mxu0 %v1413
    %1848 = vmatprep.subr.bf16.mxu0 %v1412
    %1849 = vmatpush1.bf16.msra.mxu0 %v1411
    %1850 = vmatprep.subr.bf16.mxu0 %v1410
    %1851 = vmatpush1.bf16.msra.mxu0 %v1409
    %1852 = vmatprep.subr.bf16.mxu0 %v1408
    %1853 = vmatpush1.bf16.msra.mxu0 %v1407
    %1854 = vmatprep.subr.bf16.mxu0 0
    %1855 = vmatpush2.bf16.msra.mxu0 0
    %1856 = vmatprep.subr.bf16.mxu0 0
    %1857 = vmatpush2.bf16.msra.mxu0 0
    %1858 = vmatprep.subr.bf16.mxu0 0
    %1859 = vmatpush2.bf16.msra.mxu0 0
    %1860 = vmatprep.subr.bf16.mxu0 0
    %1861 = vmatpush2.bf16.msra.mxu0 0
    %1862 = vmatprep.subr.bf16.mxu0 0
    %1863 = vmatpush2.bf16.msra.mxu0 0
    %1864 = vmatprep.subr.bf16.mxu0 0
    %1865 = vmatpush2.bf16.msra.mxu0 0
    %1866 = vmatprep.subr.bf16.mxu0 0
    %1867 = vmatpush2.bf16.msra.mxu0 0
    %1868 = vmatprep.subr.bf16.mxu0 0
    %1869 = vmatpush2.bf16.msra.mxu0 0
    %1870 = vmatprep.mubr.bf16.mxu0 0
    %1871 = vmatmul.mubr.bf16.gmra.mxu0 %v1836
    %v1872 = vpop.f32.mrf.mxu0
    %v1873 = vadd.f32 0.0, %v1872
    %v1874 = vpop.f32.mrf.mxu0
    %v1875 = vadd.f32 0.0, %v1874
    %v1876 = vpop.f32.mrf.mxu0
    %v1877 = vpop.f32.mrf.mxu0
    %1878 = vdwg.mxu0
    %v1879 = vadd.f32 %v1832, %v1873
    %v1880 = vadd.f32 %v1833, %v1875
    %v1881 = vld [vmem:[#allocation4 + $0x20] sm:$0xff]
    %v1882 = vld [vmem:[#allocation4 + $0x28] sm:$0xff]
    %v1883 = vadd.f32 %v1879, %v1881
    %v1884 = vadd.f32 %v1880, %v1882
    %v1885 = vxor.u32 %v1883, 2147483648
    %v1886 = vxor.u32 %v1884, 2147483648
    %v1887 = vmul.f32 %v1885, 1.442695
    %v1888 = vpow.pop %v1887
    %v1889 = vmul.f32 %v1886, 1.442695
    %v1890 = vpow.pop %v1889
    %v1891 = vadd.f32 %v1888, 1.0
    %v1892 = vadd.f32 %v1890, 1.0
    %v1893 = vrcp.pop %v1891
    %v1894 = vmul.f32 1.0, %v1893
    %v1895 = vrcp.pop %v1892
    %v1896 = vmul.f32 1.0, %v1895
    %v1897 = vtanh.pop %v1884
    %v1898 = vmul.f32 %v1894, %v1825
    %1900 = vrot.lane.b32.xlu0 %v1897, 64
    %v1901 = vpop.permute.xlu0 %1900
    %v1903 = vmul.f32 %v1894, %v1901
    %1905 = vrot.lane.b32.xlu0 %v1903, 64
    %v1906 = vpop.permute.xlu0 %1905
    %v1908 = vadd.f32 %v1898, %v1906
    %v1909 = vtanh.pop %v1908
    %1911 = vrot.lane.b32.xlu0 %v1909, 64
    %v1912 = vpop.permute.xlu0 %1911
    %v1914 = vmul.f32 %v1896, %v1912
    %v1915 = vld [vmem:[#allocation3 + $0x60] sm:$0xff]
    %v1916 = vld [vmem:[#allocation3 + $0x68] sm:$0xff]
    %v1917 = vpack.c.bf16 %v1914, %v1914
    %v1919 = vsel %vm393, %v1917, 0
    %1921 = vmatprep.subr.bf16.mxu0 0
    %1922 = vmatpush1.bf16.msra.mxu0 0
    %1923 = vmatprep.subr.bf16.mxu0 0
    %1924 = vmatpush1.bf16.msra.mxu0 0
    %1925 = vmatprep.subr.bf16.mxu0 0
    %1926 = vmatpush1.bf16.msra.mxu0 0
    %1927 = vmatprep.subr.bf16.mxu0 0
    %1928 = vmatpush1.bf16.msra.mxu0 0
    %1929 = vmatprep.subr.bf16.mxu0 %v1414
    %1930 = vmatpush1.bf16.msra.mxu0 %v1413
    %1931 = vmatprep.subr.bf16.mxu0 %v1412
    %1932 = vmatpush1.bf16.msra.mxu0 %v1411
    %1933 = vmatprep.subr.bf16.mxu0 %v1410
    %1934 = vmatpush1.bf16.msra.mxu0 %v1409
    %1935 = vmatprep.subr.bf16.mxu0 %v1408
    %1936 = vmatpush1.bf16.msra.mxu0 %v1407
    %1937 = vmatprep.subr.bf16.mxu0 0
    %1938 = vmatpush2.bf16.msra.mxu0 0
    %1939 = vmatprep.subr.bf16.mxu0 0
    %1940 = vmatpush2.bf16.msra.mxu0 0
    %1941 = vmatprep.subr.bf16.mxu0 0
    %1942 = vmatpush2.bf16.msra.mxu0 0
    %1943 = vmatprep.subr.bf16.mxu0 0
    %1944 = vmatpush2.bf16.msra.mxu0 0
    %1945 = vmatprep.subr.bf16.mxu0 0
    %1946 = vmatpush2.bf16.msra.mxu0 0
    %1947 = vmatprep.subr.bf16.mxu0 0
    %1948 = vmatpush2.bf16.msra.mxu0 0
    %1949 = vmatprep.subr.bf16.mxu0 0
    %1950 = vmatpush2.bf16.msra.mxu0 0
    %1951 = vmatprep.subr.bf16.mxu0 0
    %1952 = vmatpush2.bf16.msra.mxu0 0
    %1953 = vmatprep.mubr.bf16.mxu0 0
    %1954 = vmatmul.mubr.bf16.gmra.mxu0 %v1919
    %v1955 = vpop.f32.mrf.mxu0
    %v1956 = vadd.f32 0.0, %v1955
    %v1957 = vpop.f32.mrf.mxu0
    %v1958 = vadd.f32 0.0, %v1957
    %v1959 = vpop.f32.mrf.mxu0
    %v1960 = vpop.f32.mrf.mxu0
    %1961 = vdwg.mxu0
    %v1962 = vadd.f32 %v1915, %v1956
    %v1963 = vadd.f32 %v1916, %v1958
    %v1964 = vld [vmem:[#allocation4 + $0x10] sm:$0xff]
    %v1965 = vld [vmem:[#allocation4 + $0x18] sm:$0xff]
    %v1966 = vadd.f32 %v1962, %v1964
    %v1967 = vadd.f32 %v1963, %v1965
    %v1968 = vxor.u32 %v1966, 2147483648
    %v1969 = vxor.u32 %v1967, 2147483648
    %v1970 = vmul.f32 %v1968, 1.442695
    %v1971 = vpow.pop %v1970
    %v1972 = vmul.f32 %v1969, 1.442695
    %v1973 = vpow.pop %v1972
    %v1974 = vadd.f32 %v1971, 1.0
    %v1975 = vadd.f32 %v1973, 1.0
    %v1976 = vrcp.pop %v1974
    %v1977 = vmul.f32 1.0, %v1976
    %v1978 = vrcp.pop %v1975
    %v1979 = vmul.f32 1.0, %v1978
    %v1980 = vtanh.pop %v1967
    %v1981 = vmul.f32 %v1977, %v1908
    %1983 = vrot.lane.b32.xlu0 %v1980, 64
    %v1984 = vpop.permute.xlu0 %1983
    %v1986 = vmul.f32 %v1977, %v1984
    %1988 = vrot.lane.b32.xlu0 %v1986, 64
    %v1989 = vpop.permute.xlu0 %1988
    %v1991 = vadd.f32 %v1981, %v1989
    %v1992 = vtanh.pop %v1991
    %1994 = vrot.lane.b32.xlu0 %v1992, 64
    %v1995 = vpop.permute.xlu0 %1994
    %v1997 = vmul.f32 %v1979, %v1995
    %v1998 = vld [vmem:[#allocation3 + $0x70] sm:$0xff]
    %v1999 = vld [vmem:[#allocation3 + $0x78] sm:$0xff]
    %v2000 = vpack.c.bf16 %v1997, %v1997
    %v2002 = vsel %vm393, %v2000, 0
    %2004 = vmatprep.subr.bf16.mxu0 0
    %2005 = vmatpush1.bf16.msra.mxu0 0
    %2006 = vmatprep.subr.bf16.mxu0 0
    %2007 = vmatpush1.bf16.msra.mxu0 0
    %2008 = vmatprep.subr.bf16.mxu0 0
    %2009 = vmatpush1.bf16.msra.mxu0 0
    %2010 = vmatprep.subr.bf16.mxu0 0
    %2011 = vmatpush1.bf16.msra.mxu0 0
    %2012 = vmatprep.subr.bf16.mxu0 %v1414
    %2013 = vmatpush1.bf16.msra.mxu0 %v1413
    %2014 = vmatprep.subr.bf16.mxu0 %v1412
    %2015 = vmatpush1.bf16.msra.mxu0 %v1411
    %2016 = vmatprep.subr.bf16.mxu0 %v1410
    %2017 = vmatpush1.bf16.msra.mxu0 %v1409
    %2018 = vmatprep.subr.bf16.mxu0 %v1408
    %2019 = vmatpush1.bf16.msra.mxu0 %v1407
    %2020 = vmatprep.subr.bf16.mxu0 0
    %2021 = vmatpush2.bf16.msra.mxu0 0
    %2022 = vmatprep.subr.bf16.mxu0 0
    %2023 = vmatpush2.bf16.msra.mxu0 0
    %2024 = vmatprep.subr.bf16.mxu0 0
    %2025 = vmatpush2.bf16.msra.mxu0 0
    %2026 = vmatprep.subr.bf16.mxu0 0
    %2027 = vmatpush2.bf16.msra.mxu0 0
    %2028 = vmatprep.subr.bf16.mxu0 0
    %2029 = vmatpush2.bf16.msra.mxu0 0
    %2030 = vmatprep.subr.bf16.mxu0 0
    %2031 = vmatpush2.bf16.msra.mxu0 0
    %2032 = vmatprep.subr.bf16.mxu0 0
    %2033 = vmatpush2.bf16.msra.mxu0 0
    %2034 = vmatprep.subr.bf16.mxu0 0
    %2035 = vmatpush2.bf16.msra.mxu0 0
    %2036 = vmatprep.mubr.bf16.mxu0 0
    %2037 = vmatmul.mubr.bf16.gmra.mxu0 %v2002
    %v2038 = vpop.f32.mrf.mxu0
    %v2039 = vadd.f32 0.0, %v2038
    %v2040 = vpop.f32.mrf.mxu0
    %v2041 = vadd.f32 0.0, %v2040
    %v2042 = vpop.f32.mrf.mxu0
    %v2043 = vpop.f32.mrf.mxu0
    %2044 = vdwg.mxu0
    %v2045 = vadd.f32 %v1998, %v2039
    %v2046 = vadd.f32 %v1999, %v2041
    %v2047 = vld [vmem:[#allocation4] sm:$0xff]
    %v2048 = vld [vmem:[#allocation4 + $0x8] sm:$0xff]
    %v2049 = vadd.f32 %v2045, %v2047
    %v2050 = vadd.f32 %v2046, %v2048
    %v2051 = vxor.u32 %v2049, 2147483648
    %v2052 = vxor.u32 %v2050, 2147483648
    %v2053 = vmul.f32 %v2051, 1.442695
    %v2054 = vpow.pop %v2053
    %v2055 = vmul.f32 %v2052, 1.442695
    %v2056 = vpow.pop %v2055
    %v2057 = vadd.f32 %v2054, 1.0
    %v2058 = vadd.f32 %v2056, 1.0
    %v2059 = vrcp.pop %v2057
    %v2060 = vmul.f32 1.0, %v2059
    %v2061 = vrcp.pop %v2058
    %v2062 = vmul.f32 1.0, %v2061
    %v2063 = vtanh.pop %v2050
    %v2064 = vmul.f32 %v2060, %v1991
    %2066 = vrot.lane.b32.xlu0 %v2063, 64
    %v2067 = vpop.permute.xlu0 %2066
    %v2069 = vmul.f32 %v2060, %v2067
    %2071 = vrot.lane.b32.xlu0 %v2069, 64
    %v2072 = vpop.permute.xlu0 %2071
    %v2074 = vadd.f32 %v2064, %v2072
    %v2075 = vtanh.pop %v2074
    %2077 = vrot.lane.b32.xlu0 %v2075, 64
    %v2078 = vpop.permute.xlu0 %2077
    %v2080 = vmul.f32 %v2062, %v2078
    %v2081 = vlaneseq
    %v2082 = vand.u32 %v2081, 127
    %vm2083 = vcmp.lt.s32.totalorder %v2082, 32
    %v2084 = vsel %vm2083, %v2080, %v1499
    %2085 = vst.msk [vmem:[%s9] sm:$0xff] %vm393, %v2084
    // Predicated region
    $region54: #{lstm_pallas_forward.1} parent=1 // pred_check
      _
    $region55: #{lstm_pallas_forward.1} parent=1 // pred_check_branch
      %2087 = sbr.rel (0) target = $region57
    $region56: #{lstm_pallas_forward.1} parent=1 // pred_region
      _
    $region57: #{lstm_pallas_forward.1} parent=1 // pred_fallthru
      _
    // Predicated region
    $region58: #{lstm_pallas_forward.1} parent=1 // pred_check
      _
    $region59: #{lstm_pallas_forward.1} parent=1 // pred_check_branch
      %2089 = sbr.rel (0) target = $region61
    $region60: #{lstm_pallas_forward.1} parent=1 // pred_region
      _
    $region61: #{lstm_pallas_forward.1} parent=1 // pred_fallthru
      _
    %2090 = vsyncpa [#allocation6], 1
    %2091 = vsyncpa [#allocation8], 1
    %2092 = vsyncpa [#allocation11], 1

</llo_original>
